<compile_context>
chip_gen: v6e
topology: v6e:2x2x1
jax: 0.10.0
libtpu: 0.0.40
codegen_flags: <defaults>
</compile_context>

<pallas_src>
import functools

import jax
import jax.numpy as jnp
from jax.experimental import pallas as pl
from jax.experimental.pallas import tpu as pltpu

NUM_ANCHORS = 10
PROJ_DIM = 128  # cfg['MODEL']['PROJECTION']['DIM']
INT32_MAX = 2 ** 31 - 1


def _round_up(x, m):
    return ((x + m - 1) // m) * m


# ----------------------------------------------------------------------------
# Pallas kernel 1: fused stem + projection head
#   x(N,Cpad8) --VPU FMA--> ReLU(x@Ws+bs) --MXU--> ReLU(h@W1+b1) --MXU--> h@W2+b2
# ----------------------------------------------------------------------------
def _fused_proj_kernel(c_in, x_ref, ws_ref, bs_ref, w1_ref, b1_ref,
                       w2_ref, b2_ref, o_ref):
    x = x_ref[...]                                     # (tm, c_pad8) f32
    # Stem as c_in broadcast FMAs on the VPU (K=3 would waste the MXU and
    # force padding K to 128).
    acc = x[:, 0:1] * ws_ref[0:1, :]                   # (tm, 256)
    for k in range(1, c_in):
        acc = acc + x[:, k:k + 1] * ws_ref[k:k + 1, :]
    h0 = jnp.maximum(acc + bs_ref[...], 0.0).astype(jnp.bfloat16)
    h1 = jnp.dot(h0, w1_ref[...],
                 preferred_element_type=jnp.float32) + b1_ref[...]
    h1 = jnp.maximum(h1, 0.0).astype(jnp.bfloat16)
    out = jnp.dot(h1, w2_ref[...],
                  preferred_element_type=jnp.float32) + b2_ref[...]
    o_ref[...] = out.astype(o_ref.dtype)


def fused_proj_head_pallas(x, ws, bs, w1, b1, w2, b2, *, tm, c_in):
    """x: (N, Cpad8) f32, N multiple of tm.  Returns (N, proj_dim) float32."""
    n, c = x.shape
    stem_out = ws.shape[1]
    hdim = w1.shape[1]
    d = w2.shape[1]
    assert n % tm == 0
    return pl.pallas_call(
        functools.partial(_fused_proj_kernel, c_in),
        out_shape=jax.ShapeDtypeStruct((n, d), jnp.float32),
        grid_spec=pltpu.PrefetchScalarGridSpec(
            num_scalar_prefetch=0,
            grid=(n // tm,),
            in_specs=[
                pl.BlockSpec((tm, c), lambda i: (i, 0)),
                pl.BlockSpec((c, stem_out), lambda i: (0, 0)),
                pl.BlockSpec((1, stem_out), lambda i: (0, 0)),
                pl.BlockSpec((stem_out, hdim), lambda i: (0, 0)),
                pl.BlockSpec((1, hdim), lambda i: (0, 0)),
                pl.BlockSpec((hdim, d), lambda i: (0, 0)),
                pl.BlockSpec((1, d), lambda i: (0, 0)),
            ],
            out_specs=pl.BlockSpec((tm, d), lambda i: (i, 0)),
        ),
        compiler_params=pltpu.CompilerParams(
            dimension_semantics=("parallel",)),
    )(x, ws, bs.reshape(1, -1), w1, b1.reshape(1, -1), w2, b2.reshape(1, -1))


# ----------------------------------------------------------------------------
# Pallas kernel 2: squared distances from grid cells to crop centers plus
# per-(level,batch) running min / argmin, over ONE flattened ragged lane axis
# covering all FPN levels (each level padded only to a chunk multiple).
# Coordinates / validity are generated in-kernel from iota + scalar-prefetched
# per-level tables, so the kernel has no large input DMA at all.
#   grid = (n_chunks,)  -- reduction axis, min/argmin carried in resident
#   lane-dense (B,128) output blocks selected by the prefetched level id.
# ----------------------------------------------------------------------------
def _dist_argmin_kernel(cl_ref, cp_ref, lw_ref, lhw_ref, lsc_ref,
                        cx_ref, cy_ref,
                        dist_ref, idx_ref, mind_ref):
    s = pl.program_id(0)
    lev = cl_ref[s]                         # level id of this chunk
    pos = cp_ref[s]                         # chunk index within the level
    w_i = lw_ref[lev]                       # level width (int)
    hw_i = lhw_ref[lev]                     # number of valid cells (int)
    scale = lsc_ref[lev]                    # Wimg / h_level (f32)
    chunk = dist_ref.shape[-1]

    # flat in-level cell index for every lane of this chunk
    fi = jax.lax.broadcasted_iota(jnp.int32, (1, chunk), 1) + pos * chunk
    fi_f = fi.astype(jnp.float32)
    w_f = jnp.broadcast_to(w_i, (1, 1)).astype(jnp.float32)
    gy_i = jnp.floor((fi_f + 0.5) / w_f)    # row = fi // w  (exact for our sizes)
    gx_i = fi_f - gy_i * w_f                # col = fi %  w
    gx = gx_i * scale
    gy = gy_i * scale

    cx = cx_ref[...]                        # (B, 1)
    cy = cy_ref[...]                        # (B, 1)
    d = (gx - cx) ** 2 + (gy - cy) ** 2     # (B, chunk)
    valid = fi < hw_i                       # (1, chunk)
    d = jnp.where(valid, d, jnp.inf)        # padded lanes never win
    dist_ref[...] = d

    @pl.when(pos == 0)
    def _():
        mind_ref[...] = jnp.full(mind_ref.shape, jnp.inf, jnp.float32)
        idx_ref[...] = jnp.full(idx_ref.shape, INT32_MAX, jnp.int32)

    # chunk-local min and first-occurrence argmin (in-level flat index)
    c_min = jnp.min(d, axis=1, keepdims=True)                          # (B,1)
    ii = jnp.broadcast_to(fi, d.shape)
    c_arg = jnp.min(jnp.where(d <= c_min, ii, INT32_MAX),
                    axis=1, keepdims=True)                             # (B,1)

    prev_min = mind_ref[:, 0:1]
    prev_idx = idx_ref[:, 0:1]
    better = c_min < prev_min               # strict < keeps earliest index on ties
    new_min = jnp.where(better, c_min, prev_min)
    new_idx = jnp.where(better, c_arg, prev_idx)
    # lane-dense writebacks (avoid last-dim-1 masked partial stores)
    mind_ref[...] = jnp.broadcast_to(new_min, mind_ref.shape)
    idx_ref[...] = jnp.broadcast_to(new_idx, idx_ref.shape)


def dist_argmin_pallas(chunk_level, chunk_pos, lev_w, lev_hw, lev_scale,
                       cx, cy, *, chunk, total_pad, n_levels):
    n_chunks = chunk_level.shape[0]
    b = cx.shape[0]
    # TODO(synk): with B=2 only 2/8 sublanes of each vreg are used; packing
    # several spatial chunks into the sublane dim (or splitting the chunk axis
    # in two "parallel" halves for v7x's 2 TensorCores) is a further win.
    return pl.pallas_call(
        _dist_argmin_kernel,
        out_shape=(
            jax.ShapeDtypeStruct((b, total_pad), jnp.float32),
            jax.ShapeDtypeStruct((n_levels, b, 128), jnp.int32),
            jax.ShapeDtypeStruct((n_levels, b, 128), jnp.float32),
        ),
        grid_spec=pltpu.PrefetchScalarGridSpec(
            num_scalar_prefetch=5,
            grid=(n_chunks,),
            in_specs=[
                pl.BlockSpec((b, 1), lambda s, cl, cp, lw, lhw, lsc: (0, 0)),
                pl.BlockSpec((b, 1), lambda s, cl, cp, lw, lhw, lsc: (0, 0)),
            ],
            out_specs=[
                pl.BlockSpec((b, chunk),
                             lambda s, cl, cp, lw, lhw, lsc: (0, s)),
                pl.BlockSpec((None, b, 128),
                             lambda s, cl, cp, lw, lhw, lsc: (cl[s], 0, 0)),
                pl.BlockSpec((None, b, 128),
                             lambda s, cl, cp, lw, lhw, lsc: (cl[s], 0, 0)),
            ],
        ),
        compiler_params=pltpu.CompilerParams(
            dimension_semantics=("arbitrary",)),
    )(chunk_level, chunk_pos, lev_w, lev_hw, lev_scale, cx, cy)


# ----------------------------------------------------------------------------
# Parameter init (deterministic, in-script)
# ----------------------------------------------------------------------------
def init_params(key, c_in=3, proj_dim=PROJ_DIM):
    ks = jax.random.split(key, 5)
    return dict(
        w_stem=jax.random.normal(ks[0], (c_in, 256), jnp.float32) * 0.05,
        b_stem=jnp.zeros((256,), jnp.float32),
        w1=jax.random.normal(ks[1], (256, 512), jnp.float32) * 0.02,
        b1=jax.random.normal(ks[2], (512,), jnp.float32) * 0.01,
        w2=jax.random.normal(ks[3], (512, proj_dim), jnp.float32) * 0.02,
        b2=jax.random.normal(ks[4], (proj_dim,), jnp.float32) * 0.01,
    )


# ----------------------------------------------------------------------------
# Forward pass (glue in plain JAX, hot paths in Pallas)
# ----------------------------------------------------------------------------
def fpn_encoder_forward(x, crop_coords, params, key):
    B, C, Himg, Wimg = x.shape
    proj_dim = params["w2"].shape[1]

    # ---- synthetic FPN backbone: hierarchical average pooling --------------
    # (reads the full image from HBM once; strides 8/16/32 derive from stride 4)
    levels = []
    pooled = []
    f = x
    prev_stride = 1
    for stride in (4, 8, 16, 32):
        factor = stride // prev_stride
        b_, c_, hh, ww = f.shape
        f = f.reshape(b_, c_, hh // factor, factor,
                      ww // factor, factor).mean(axis=(3, 5))   # (B,C,h,w)
        prev_stride = stride
        h, w = f.shape[2], f.shape[3]
        levels.append((h, w))
        pooled.append(jnp.transpose(f, (0, 2, 3, 1)).reshape(b_ * h * w, c_))

    # ---- fused stem + projection head (single Pallas kernel) ---------------
    feats = jnp.concatenate(pooled, axis=0)                 # (Ntot, C) f32
    n_tot = feats.shape[0]
    # adaptive row tile: big to amortize per-step overhead (v5e/v6e), but keep
    # >= 2 grid steps where possible so v7x can shard across both TensorCores
    tm = 2048
    while tm > 256 and n_tot < 2 * tm:
        tm //= 2
    n_pad = _round_up(max(n_tot, tm), tm)
    c_pad = _round_up(C, 8)                                 # sublane-friendly, NOT 128
    feats_p = jnp.pad(feats, ((0, n_pad - n_tot), (0, c_pad - C)))
    ws_p = jnp.pad(params["w_stem"], ((0, c_pad - C), (0, 0)))
    proj = fused_proj_head_pallas(
        feats_p, ws_p, params["b_stem"],
        params["w1"].astype(jnp.bfloat16), params["b1"],
        params["w2"].astype(jnp.bfloat16), params["b2"],
        tm=tm, c_in=C)[:n_tot]

    # crop_coords[b] = (y, x, h, w) -> crop centers in image pixels
    center_y = crop_coords[:, 0] + crop_coords[:, 2] / 2.0
    center_x = crop_coords[:, 1] + crop_coords[:, 3] / 2.0
    cx = center_x.reshape(B, 1).astype(jnp.float32)
    cy = center_y.reshape(B, 1).astype(jnp.float32)

    # ---- flattened ragged lane axis over all levels -------------------------
    max_hw = max(h * w for (h, w) in levels)
    chunk = max(128, min(4096, _round_up(max(max_hw // 8, 1), 128)))
    region_sizes = [_round_up(h * w, chunk) for (h, w) in levels]
    region_offsets = []
    total_pad = 0
    for r in region_sizes:
        region_offsets.append(total_pad)
        total_pad += r
    chunk_level_l, chunk_pos_l = [], []
    for li, r in enumerate(region_sizes):
        for p in range(r // chunk):
            chunk_level_l.append(li)
            chunk_pos_l.append(p)
    chunk_level = jnp.array(chunk_level_l, jnp.int32)
    chunk_pos = jnp.array(chunk_pos_l, jnp.int32)
    lev_w = jnp.array([w for (_, w) in levels], jnp.int32)
    lev_hw = jnp.array([h * w for (h, w) in levels], jnp.int32)
    # NOTE: matches the reference `scale = x.shape[-1] / h` (width / feat-height)
    lev_scale = jnp.array([float(Wimg) / float(h) for (h, _) in levels],
                          jnp.float32)

    dist_all, idx_all, mind_all = dist_argmin_pallas(
        chunk_level, chunk_pos, lev_w, lev_hw, lev_scale, cx, cy,
        chunk=chunk, total_pad=total_pad, n_levels=len(levels))

    # ---- positive / negative feature sampling (level-major, batch-minor) ----
    pos_list = []
    neg_list = []
    level_keys = jax.random.split(key, len(levels))
    offset = 0
    for li, (h, w) in enumerate(levels):
        hw = h * w
        n = B * hw
        fl = proj[offset:offset + n].reshape(B, hw, proj_dim)
        offset += n

        minidx = idx_all[li, :, 0]                          # (B,) in-level index
        pos = fl[jnp.arange(B), minidx]                     # (B, D)
        pos_list.append(pos)

        # negative sampling: points with distance > 2 * min_distance
        roff = region_offsets[li]
        rsz = region_sizes[li]
        dist = dist_all[:, roff:roff + rsz]                 # (B, rsz)
        mind = mind_all[li, :, 0:1]                         # (B, 1)
        thr = mind * 2.0
        valid_b = (jnp.arange(rsz) < hw)[None, :]
        cand = (dist > thr) & valid_b                       # (B, rsz)
        n_valid = cand.sum(axis=1)                          # (B,)
        k_perm, k_repl = jax.random.split(level_keys[li])
        rand = jax.random.uniform(k_perm, (B, rsz))
        score = jnp.where(cand, rand, -1.0)
        # top-k random valid candidates (O(hw), replaces full argsort)
        _, order_k = jax.lax.top_k(score, NUM_ANCHORS)      # (B, A)
        base = jnp.arange(NUM_ANCHORS)[None, :]
        repl = jax.random.randint(k_repl, (B, NUM_ANCHORS), 0, INT32_MAX)
        repl = repl % jnp.maximum(n_valid, 1)[:, None]
        sel = jnp.where(base < n_valid[:, None], base, repl)
        neg_idx = jnp.take_along_axis(order_k, sel, axis=1)  # (B, A)
        neg_idx = jnp.minimum(neg_idx, hw - 1)               # safety clamp
        neg = fl[jnp.arange(B)[:, None], neg_idx]            # (B, A, D)
        neg_list.append(neg)

    # final stacking / reshaping / means — identical to the reference code
    pos_all = jnp.concatenate(pos_list, axis=0)             # (L*B, D)
    pos_all = pos_all.reshape(B, -1, proj_dim)
    z_j = jnp.mean(pos_all, axis=1)                         # (B, D)

    neg_all = jnp.concatenate(neg_list, axis=0)             # (L*B, A, D)
    neg_all = neg_all.reshape(B, -1, NUM_ANCHORS, proj_dim)
    z_a = jnp.mean(neg_all, axis=1)                         # (B, A, D)
    return z_j, z_a


if __name__ == "__main__":
    key = jax.random.PRNGKey(0)
    kx, kp, ks = jax.random.split(key, 3)

    B, C, Himg, Wimg = 2, 3, 64, 64
    x = jax.random.normal(kx, (B, C, Himg, Wimg), jnp.float32)
    # crop_coords rows are (y, x, h, w) in image pixels
    crop_coords = jnp.array([[4.0, 6.0, 8.0, 8.0],
                             [36.0, 32.0, 16.0, 16.0]], jnp.float32)

    params = init_params(kp, c_in=C, proj_dim=PROJ_DIM)
    z_j, z_a = fpn_encoder_forward(x, crop_coords, params, ks)
    jax.block_until_ready((z_j, z_a))

    assert z_j.shape == (B, PROJ_DIM), z_j.shape
    assert z_a.shape == (B, NUM_ANCHORS, PROJ_DIM), z_a.shape
    assert jnp.all(jnp.isfinite(z_j)) and jnp.all(jnp.isfinite(z_a))
    print("KERNEL_OK")
</pallas_src>

<mosaic_0001>
module attributes {stable_mosaic.version = 11 : i64} {
  func.func @_fused_proj_kernel(%arg0: i32, %arg1: memref<256x8xf32, #tpu.memory_space<vmem>>, %arg2: memref<8x256xf32, #tpu.memory_space<vmem>>, %arg3: memref<1x256xf32, #tpu.memory_space<vmem>>, %arg4: memref<256x512xbf16, #tpu.memory_space<vmem>>, %arg5: memref<1x512xf32, #tpu.memory_space<vmem>>, %arg6: memref<512x128xbf16, #tpu.memory_space<vmem>>, %arg7: memref<1x128xf32, #tpu.memory_space<vmem>>, %arg8: memref<256x128xf32, #tpu.memory_space<vmem>>) attributes {dimension_semantics = [#tpu.dimension_semantics<parallel>], iteration_bounds = array<i64: 3>, scalar_prefetch = 0 : i64, scratch_operands = 0 : i64, tpu.core_type = #tpu.core_type<tc>, window_params = [{transform_indices = @transform_0, window_bounds = array<i64: 256, 8>}, {pipeline_mode = #tpu.pipeline_mode<synchronous>, transform_indices = @transform_1, window_bounds = array<i64: 8, 256>}, {pipeline_mode = #tpu.pipeline_mode<synchronous>, transform_indices = @transform_2, window_bounds = array<i64: 1, 256>}, {pipeline_mode = #tpu.pipeline_mode<synchronous>, transform_indices = @transform_3, window_bounds = array<i64: 256, 512>}, {pipeline_mode = #tpu.pipeline_mode<synchronous>, transform_indices = @transform_4, window_bounds = array<i64: 1, 512>}, {pipeline_mode = #tpu.pipeline_mode<synchronous>, transform_indices = @transform_5, window_bounds = array<i64: 512, 128>}, {pipeline_mode = #tpu.pipeline_mode<synchronous>, transform_indices = @transform_6, window_bounds = array<i64: 1, 128>}, {transform_indices = @transform_7, window_bounds = array<i64: 256, 128>}]} {
    %c0 = arith.constant 0 : index
    %c0_0 = arith.constant 0 : index
    %0 = vector.load %arg1[%c0, %c0_0] : memref<256x8xf32, #tpu.memory_space<vmem>>, vector<256x8xf32>
    %1 = vector.extract_strided_slice %0 {offsets = [0, 0], sizes = [256, 1], strides = [1, 1]} : vector<256x8xf32> to vector<256x1xf32>
    %c0_1 = arith.constant 0 : index
    %c0_2 = arith.constant 0 : index
    %2 = vector.load %arg2[%c0_1, %c0_2] : memref<8x256xf32, #tpu.memory_space<vmem>>, vector<1x256xf32>
    %3 = vector.broadcast %1 : vector<256x1xf32> to vector<256x256xf32>
    %4 = vector.broadcast %2 : vector<1x256xf32> to vector<256x256xf32>
    %5 = arith.mulf %3, %4 : vector<256x256xf32>
    %6 = vector.extract_strided_slice %0 {offsets = [0, 1], sizes = [256, 1], strides = [1, 1]} : vector<256x8xf32> to vector<256x1xf32>
    %c1 = arith.constant 1 : index
    %c0_3 = arith.constant 0 : index
    %7 = vector.load %arg2[%c1, %c0_3] : memref<8x256xf32, #tpu.memory_space<vmem>>, vector<1x256xf32>
    %8 = vector.broadcast %6 : vector<256x1xf32> to vector<256x256xf32>
    %9 = vector.broadcast %7 : vector<1x256xf32> to vector<256x256xf32>
    %10 = arith.mulf %8, %9 : vector<256x256xf32>
    %11 = arith.addf %5, %10 : vector<256x256xf32>
    %12 = vector.extract_strided_slice %0 {offsets = [0, 2], sizes = [256, 1], strides = [1, 1]} : vector<256x8xf32> to vector<256x1xf32>
    %c2 = arith.constant 2 : index
    %c0_4 = arith.constant 0 : index
    %13 = vector.load %arg2[%c2, %c0_4] : memref<8x256xf32, #tpu.memory_space<vmem>>, vector<1x256xf32>
    %14 = vector.broadcast %12 : vector<256x1xf32> to vector<256x256xf32>
    %15 = vector.broadcast %13 : vector<1x256xf32> to vector<256x256xf32>
    %16 = arith.mulf %14, %15 : vector<256x256xf32>
    %17 = arith.addf %11, %16 : vector<256x256xf32>
    %c0_5 = arith.constant 0 : index
    %c0_6 = arith.constant 0 : index
    %18 = vector.load %arg3[%c0_5, %c0_6] : memref<1x256xf32, #tpu.memory_space<vmem>>, vector<1x256xf32>
    %19 = vector.broadcast %18 : vector<1x256xf32> to vector<256x256xf32>
    %20 = arith.addf %17, %19 : vector<256x256xf32>
    %cst = arith.constant 0.000000e+00 : f32
    %21 = vector.broadcast %cst : f32 to vector<256x256xf32>
    %22 = arith.maximumf %20, %21 : vector<256x256xf32>
    %23 = arith.truncf %22 : vector<256x256xf32> to vector<256x256xbf16>
    %c0_7 = arith.constant 0 : index
    %c0_8 = arith.constant 0 : index
    %24 = vector.load %arg4[%c0_7, %c0_8] : memref<256x512xbf16, #tpu.memory_space<vmem>>, vector<256x512xbf16>
    %cst_9 = arith.constant dense<0.000000e+00> : vector<256x512xf32>
    %25 = tpu.matmul %23, %24, %cst_9 {dimension_numbers = #tpu.dot_dimension_numbers<[1], [0], [0], [1], [0, 0, 1, 1], [], []>} : vector<256x256xbf16>, vector<256x512xbf16>, vector<256x512xf32> -> vector<256x512xf32>
    %c0_10 = arith.constant 0 : index
    %c0_11 = arith.constant 0 : index
    %26 = vector.load %arg5[%c0_10, %c0_11] : memref<1x512xf32, #tpu.memory_space<vmem>>, vector<1x512xf32>
    %27 = vector.broadcast %26 : vector<1x512xf32> to vector<256x512xf32>
    %28 = arith.addf %25, %27 : vector<256x512xf32>
    %cst_12 = arith.constant 0.000000e+00 : f32
    %29 = vector.broadcast %cst_12 : f32 to vector<256x512xf32>
    %30 = arith.maximumf %28, %29 : vector<256x512xf32>
    %31 = arith.truncf %30 : vector<256x512xf32> to vector<256x512xbf16>
    %c0_13 = arith.constant 0 : index
    %c0_14 = arith.constant 0 : index
    %32 = vector.load %arg6[%c0_13, %c0_14] : memref<512x128xbf16, #tpu.memory_space<vmem>>, vector<512x128xbf16>
    %cst_15 = arith.constant dense<0.000000e+00> : vector<256x128xf32>
    %33 = tpu.matmul %31, %32, %cst_15 {dimension_numbers = #tpu.dot_dimension_numbers<[1], [0], [0], [1], [0, 0, 1, 1], [], []>} : vector<256x512xbf16>, vector<512x128xbf16>, vector<256x128xf32> -> vector<256x128xf32>
    %c0_16 = arith.constant 0 : index
    %c0_17 = arith.constant 0 : index
    %34 = vector.load %arg7[%c0_16, %c0_17] : memref<1x128xf32, #tpu.memory_space<vmem>>, vector<1x128xf32>
    %35 = vector.broadcast %34 : vector<1x128xf32> to vector<256x128xf32>
    %36 = arith.addf %33, %35 : vector<256x128xf32>
    %c0_18 = arith.constant 0 : index
    %c0_19 = arith.constant 0 : index
    %37 = vector.load %arg8[%c0_18, %c0_19] : memref<256x128xf32, #tpu.memory_space<vmem>>, vector<256x128xf32>
    tpu.vector_store %arg8[%c0_18, %c0_19], %36 {strides = array<i32>} : memref<256x128xf32, #tpu.memory_space<vmem>>, vector<256x128xf32>,
    return
  }
  func.func @transform_0(%arg0: i32) -> (i32, i32) {
    %c0_i32 = arith.constant 0 : i32
    %c0_i32_0 = arith.constant 0 : i32
    return %arg0, %c0_i32 : i32, i32
  }
  func.func @transform_1(%arg0: i32) -> (i32, i32) {
    %c0_i32 = arith.constant 0 : i32
    %c0_i32_0 = arith.constant 0 : i32
    %c0_i32_1 = arith.constant 0 : i32
    return %c0_i32, %c0_i32_0 : i32, i32
  }
  func.func @transform_2(%arg0: i32) -> (i32, i32) {
    %c0_i32 = arith.constant 0 : i32
    %c0_i32_0 = arith.constant 0 : i32
    %c0_i32_1 = arith.constant 0 : i32
    return %c0_i32, %c0_i32_0 : i32, i32
  }
  func.func @transform_3(%arg0: i32) -> (i32, i32) {
    %c0_i32 = arith.constant 0 : i32
    %c0_i32_0 = arith.constant 0 : i32
    %c0_i32_1 = arith.constant 0 : i32
    return %c0_i32, %c0_i32_0 : i32, i32
  }
  func.func @transform_4(%arg0: i32) -> (i32, i32) {
    %c0_i32 = arith.constant 0 : i32
    %c0_i32_0 = arith.constant 0 : i32
    %c0_i32_1 = arith.constant 0 : i32
    return %c0_i32, %c0_i32_0 : i32, i32
  }
  func.func @transform_5(%arg0: i32) -> (i32, i32) {
    %c0_i32 = arith.constant 0 : i32
    %c0_i32_0 = arith.constant 0 : i32
    %c0_i32_1 = arith.constant 0 : i32
    return %c0_i32, %c0_i32_0 : i32, i32
  }
  func.func @transform_6(%arg0: i32) -> (i32, i32) {
    %c0_i32 = arith.constant 0 : i32
    %c0_i32_0 = arith.constant 0 : i32
    %c0_i32_1 = arith.constant 0 : i32
    return %c0_i32, %c0_i32_0 : i32, i32
  }
  func.func @transform_7(%arg0: i32) -> (i32, i32) {
    %c0_i32 = arith.constant 0 : i32
    %c0_i32_0 = arith.constant 0 : i32
    return %arg0, %c0_i32 : i32, i32
  }
}

</mosaic_0001>

<llo_original>
// kernel: tpu_custom_call.1
$region0: #{tpu_custom_call.1}
  #allocation0 [shape = 'u32[]', space=smem, size = 0x4, offset = 0x4, fixed_abs, tag = 'smem constant byte address 0x4 - core index']
  #allocation1 [shape = 'u32[144,128]{1,0:T(1,128)}', space=vmem, size = 0x12000, scoped, tag = 'internal scratch']
  %s0 = inlined_call_operand.vmem [shape: f32[768,8], index: 0, kind: input, shape index: {}]
  %s1 = inlined_call_operand.vmem [shape: f32[8,256], index: 1, kind: input, shape index: {}]
  %s2 = inlined_call_operand.vmem [shape: f32[1,256], index: 2, kind: input, shape index: {}]
  %s3 = inlined_call_operand.vmem [shape: bf16[256,512], index: 3, kind: input, shape index: {}]
  %s4 = inlined_call_operand.vmem [shape: f32[1,512], index: 4, kind: input, shape index: {}]
  %s5 = inlined_call_operand.vmem [shape: bf16[512,128], index: 5, kind: input, shape index: {}]
  %s6 = inlined_call_operand.vmem [shape: f32[1,128], index: 6, kind: input, shape index: {}]
  %s7 = inlined_call_operand.hbm [shape: f32[768,128], index: 7, kind: output, shape index: {}]
  %s8 = sld [smem:[#allocation0]]
  $region61: #{tpu_custom_call.1} parent=0
    _
  %s10 = ssub.s32 1, %s8
  %s11 = scalar_select 0, %s10, %s8
  $region1: #{tpu_custom_call.1} parent=0
    #allocation2 [shape = 'u8[262144]{0}', space=vmem, size = 0x40000, scoped, tag = 'output window, operand 0']
    #allocation3 [shape = 's32[2]{0}', space=sflag, size = 0x8, scoped, tag = 'scoped memory for tpu_custom_call.1']
    %12 = vsyncpa [#allocation3], 0
    %s13 = scalar_lea.sflag [#allocation3], 1
    %14 = vsyncpa %s13, 0
    loop: start=0, step=1, limit=5
    $region2: #{tpu_custom_call.1} parent=1 // loop_pre_header
      _
    $region3: #{tpu_custom_call.1} parent=1 // loop_header
      %s16 = sphi 0, %s20
      %p17 = scmp.ge.s32.totalorder %s16, 5
      %s26 = sphi 0, %s28
      %s29 = sphi 0, %s26
      %s30 = sphi 0, %s29
      %s46 = sphi 0, %s30
      %s50 = sphi 0, %s50
      %s52 = sphi 0, %s50
      %s53 = sphi 0, %s52
      %s67 = sphi 0, %s53
      %s71 = sphi 0, %s71
      %s73 = sphi 0, %s71
      %s74 = sphi 0, %s73
      %s88 = sphi 0, %s74
      %s92 = sphi 0, %s92
      %s94 = sphi 0, %s92
      %s95 = sphi 0, %s94
      %s109 = sphi 0, %s95
      %s113 = sphi 0, %s113
      %s115 = sphi 0, %s113
      %s116 = sphi 0, %s115
      %s130 = sphi 0, %s116
      %s134 = sphi 0, %s134
      %s136 = sphi 0, %s134
      %s137 = sphi 0, %s136
      %s151 = sphi 0, %s137
      %s155 = sphi 0, %s155
      %s157 = sphi 0, %s155
      %s158 = sphi 0, %s157
      %s172 = sphi 0, %s158
      %s178 = sphi 0, %s180
      %s181 = sphi 0, %s178
      %s182 = sphi 0, %s181
      %s198 = sphi 0, %s182
    $region4: #{tpu_custom_call.1} parent=1 // loop_header_branch
      %19 = sbr.rel (%p17) target = $region8
    $region5: #{tpu_custom_call.1} parent=1 // loop_body
      %s21 = ssub.s32 %s16, 1
      %s22 = ssub.s32 %s16, 2
      %s23 = sadd.s32 %s16, 1
      %s24 = ssub.s32 %s16, %s23
      %p25 = scmp.eq.s32.totalorder %s24, 0
      %s27 = sadd.s32 %s26, 1
      %s28 = scalar_select %p25, %s26, %s27
      %p31 = pneg %p25
      %p32 = scmp.eq.s32.totalorder %s16, 2
      %p33 = por %p31, %p32
      %p34 = scmp.ne.s32.totalorder %s26, %s29
      %p35 = scmp.eq.s32.totalorder %s16, 0
      %p36 = por %p34, %p35
      %p37 = scmp.ne.s32.totalorder %s26, %s29
      %p38 = scmp.eq.s32.totalorder %s21, 2
      %p39 = por %p37, %p38
      %p40 = scmp.ne.s32.totalorder %s29, %s30
      %p41 = scmp.eq.s32.totalorder %s21, 0
      %p42 = por %p40, %p41
      %p43 = scmp.ne.s32.totalorder %s29, %s30
      %p44 = scmp.eq.s32.totalorder %s22, 2
      %p45 = por %p43, %p44
      %p47 = scmp.ne.s32.totalorder %s30, %s46
      %p48 = scmp.eq.s32.totalorder %s22, 0
      %p49 = por %p47, %p48
      %s51 = sadd.s32 %s50, 1
      %p54 = scmp.eq.s32.totalorder %s16, 2
      %p55 = scmp.ne.s32.totalorder %s50, %s52
      %p56 = scmp.eq.s32.totalorder %s16, 0
      %p57 = por %p55, %p56
      %p58 = scmp.ne.s32.totalorder %s50, %s52
      %p59 = scmp.eq.s32.totalorder %s21, 2
      %p60 = por %p58, %p59
      %p61 = scmp.ne.s32.totalorder %s52, %s53
      %p62 = scmp.eq.s32.totalorder %s21, 0
      %p63 = por %p61, %p62
      %p64 = scmp.ne.s32.totalorder %s52, %s53
      %p65 = scmp.eq.s32.totalorder %s22, 2
      %p66 = por %p64, %p65
      %p68 = scmp.ne.s32.totalorder %s53, %s67
      %p69 = scmp.eq.s32.totalorder %s22, 0
      %p70 = por %p68, %p69
      %s72 = sadd.s32 %s71, 1
      %p75 = scmp.eq.s32.totalorder %s16, 2
      %p76 = scmp.ne.s32.totalorder %s71, %s73
      %p77 = scmp.eq.s32.totalorder %s16, 0
      %p78 = por %p76, %p77
      %p79 = scmp.ne.s32.totalorder %s71, %s73
      %p80 = scmp.eq.s32.totalorder %s21, 2
      %p81 = por %p79, %p80
      %p82 = scmp.ne.s32.totalorder %s73, %s74
      %p83 = scmp.eq.s32.totalorder %s21, 0
      %p84 = por %p82, %p83
      %p85 = scmp.ne.s32.totalorder %s73, %s74
      %p86 = scmp.eq.s32.totalorder %s22, 2
      %p87 = por %p85, %p86
      %p89 = scmp.ne.s32.totalorder %s74, %s88
      %p90 = scmp.eq.s32.totalorder %s22, 0
      %p91 = por %p89, %p90
      %s93 = sadd.s32 %s92, 1
      %p96 = scmp.eq.s32.totalorder %s16, 2
      %p97 = scmp.ne.s32.totalorder %s92, %s94
      %p98 = scmp.eq.s32.totalorder %s16, 0
      %p99 = por %p97, %p98
      %p100 = scmp.ne.s32.totalorder %s92, %s94
      %p101 = scmp.eq.s32.totalorder %s21, 2
      %p102 = por %p100, %p101
      %p103 = scmp.ne.s32.totalorder %s94, %s95
      %p104 = scmp.eq.s32.totalorder %s21, 0
      %p105 = por %p103, %p104
      %p106 = scmp.ne.s32.totalorder %s94, %s95
      %p107 = scmp.eq.s32.totalorder %s22, 2
      %p108 = por %p106, %p107
      %p110 = scmp.ne.s32.totalorder %s95, %s109
      %p111 = scmp.eq.s32.totalorder %s22, 0
      %p112 = por %p110, %p111
      %s114 = sadd.s32 %s113, 1
      %p117 = scmp.eq.s32.totalorder %s16, 2
      %p118 = scmp.ne.s32.totalorder %s113, %s115
      %p119 = scmp.eq.s32.totalorder %s16, 0
      %p120 = por %p118, %p119
      %p121 = scmp.ne.s32.totalorder %s113, %s115
      %p122 = scmp.eq.s32.totalorder %s21, 2
      %p123 = por %p121, %p122
      %p124 = scmp.ne.s32.totalorder %s115, %s116
      %p125 = scmp.eq.s32.totalorder %s21, 0
      %p126 = por %p124, %p125
      %p127 = scmp.ne.s32.totalorder %s115, %s116
      %p128 = scmp.eq.s32.totalorder %s22, 2
      %p129 = por %p127, %p128
      %p131 = scmp.ne.s32.totalorder %s116, %s130
      %p132 = scmp.eq.s32.totalorder %s22, 0
      %p133 = por %p131, %p132
      %s135 = sadd.s32 %s134, 1
      %p138 = scmp.eq.s32.totalorder %s16, 2
      %p139 = scmp.ne.s32.totalorder %s134, %s136
      %p140 = scmp.eq.s32.totalorder %s16, 0
      %p141 = por %p139, %p140
      %p142 = scmp.ne.s32.totalorder %s134, %s136
      %p143 = scmp.eq.s32.totalorder %s21, 2
      %p144 = por %p142, %p143
      %p145 = scmp.ne.s32.totalorder %s136, %s137
      %p146 = scmp.eq.s32.totalorder %s21, 0
      %p147 = por %p145, %p146
      %p148 = scmp.ne.s32.totalorder %s136, %s137
      %p149 = scmp.eq.s32.totalorder %s22, 2
      %p150 = por %p148, %p149
      %p152 = scmp.ne.s32.totalorder %s137, %s151
      %p153 = scmp.eq.s32.totalorder %s22, 0
      %p154 = por %p152, %p153
      %s156 = sadd.s32 %s155, 1
      %p159 = scmp.eq.s32.totalorder %s16, 2
      %p160 = scmp.ne.s32.totalorder %s155, %s157
      %p161 = scmp.eq.s32.totalorder %s16, 0
      %p162 = por %p160, %p161
      %p163 = scmp.ne.s32.totalorder %s155, %s157
      %p164 = scmp.eq.s32.totalorder %s21, 2
      %p165 = por %p163, %p164
      %p166 = scmp.ne.s32.totalorder %s157, %s158
      %p167 = scmp.eq.s32.totalorder %s21, 0
      %p168 = por %p166, %p167
      %p169 = scmp.ne.s32.totalorder %s157, %s158
      %p170 = scmp.eq.s32.totalorder %s22, 2
      %p171 = por %p169, %p170
      %p173 = scmp.ne.s32.totalorder %s158, %s172
      %p174 = scmp.eq.s32.totalorder %s22, 0
      %p175 = por %p173, %p174
      %s176 = ssub.s32 %s16, %s23
      %p177 = scmp.eq.s32.totalorder %s176, 0
      %s179 = sadd.s32 %s178, 1
      %s180 = scalar_select %p177, %s178, %s179
      %p183 = pneg %p177
      %p184 = scmp.eq.s32.totalorder %s16, 2
      %p185 = por %p183, %p184
      %p186 = scmp.ne.s32.totalorder %s178, %s181
      %p187 = scmp.eq.s32.totalorder %s16, 0
      %p188 = por %p186, %p187
      %p189 = scmp.ne.s32.totalorder %s178, %s181
      %p190 = scmp.eq.s32.totalorder %s21, 2
      %p191 = por %p189, %p190
      %p192 = scmp.ne.s32.totalorder %s181, %s182
      %p193 = scmp.eq.s32.totalorder %s21, 0
      %p194 = por %p192, %p193
      %p195 = scmp.ne.s32.totalorder %s181, %s182
      %p196 = scmp.eq.s32.totalorder %s22, 2
      %p197 = por %p195, %p196
      %p199 = scmp.ne.s32.totalorder %s182, %s198
      %p200 = scmp.eq.s32.totalorder %s22, 0
      %p201 = por %p199, %p200
      %p202 = scmp.le.s32.totalorder 1, %s16
      %p203 = scmp.lt.s32.totalorder %s16, 4
      %p204 = pnand %p202, %p203
      %p205 = pneg %p204
      // Predicated region
      $region9: #{tpu_custom_call.1} parent=5 // pred_check
        _
      $region10: #{tpu_custom_call.1} parent=5 // pred_check_branch
        %207 = sbr.rel (%p204) target = $region12
      $region11: #{tpu_custom_call.1} parent=5 // pred_region
        %s208 = ssub.s32 %s16, 1
        // Predicated region
        $region13: #{tpu_custom_call.1} parent=11 // pred_check
          %p209 = pneg %p63
        $region14: #{tpu_custom_call.1} parent=11 // pred_check_branch
          %211 = sbr.rel (%p209) target = $region16
        $region15: #{tpu_custom_call.1} parent=11 // pred_region
          _
        $region16: #{tpu_custom_call.1} parent=11 // pred_fallthru
          _
        // Predicated region
        $region17: #{tpu_custom_call.1} parent=11 // pred_check
          %p212 = pneg %p84
        $region18: #{tpu_custom_call.1} parent=11 // pred_check_branch
          %214 = sbr.rel (%p212) target = $region20
        $region19: #{tpu_custom_call.1} parent=11 // pred_region
          _
        $region20: #{tpu_custom_call.1} parent=11 // pred_fallthru
          _
        // Predicated region
        $region21: #{tpu_custom_call.1} parent=11 // pred_check
          %p215 = pneg %p105
        $region22: #{tpu_custom_call.1} parent=11 // pred_check_branch
          %217 = sbr.rel (%p215) target = $region24
        $region23: #{tpu_custom_call.1} parent=11 // pred_region
          _
        $region24: #{tpu_custom_call.1} parent=11 // pred_fallthru
          _
        // Predicated region
        $region25: #{tpu_custom_call.1} parent=11 // pred_check
          %p218 = pneg %p126
        $region26: #{tpu_custom_call.1} parent=11 // pred_check_branch
          %220 = sbr.rel (%p218) target = $region28
        $region27: #{tpu_custom_call.1} parent=11 // pred_region
          _
        $region28: #{tpu_custom_call.1} parent=11 // pred_fallthru
          _
        // Predicated region
        $region29: #{tpu_custom_call.1} parent=11 // pred_check
          %p221 = pneg %p147
        $region30: #{tpu_custom_call.1} parent=11 // pred_check_branch
          %223 = sbr.rel (%p221) target = $region32
        $region31: #{tpu_custom_call.1} parent=11 // pred_region
          _
        $region32: #{tpu_custom_call.1} parent=11 // pred_fallthru
          _
        // Predicated region
        $region33: #{tpu_custom_call.1} parent=11 // pred_check
          %p224 = pneg %p168
        $region34: #{tpu_custom_call.1} parent=11 // pred_check_branch
          %226 = sbr.rel (%p224) target = $region36
        $region35: #{tpu_custom_call.1} parent=11 // pred_region
          _
        $region36: #{tpu_custom_call.1} parent=11 // pred_fallthru
          _
      $region12: #{tpu_custom_call.1} parent=5 // pred_fallthru
        _
      %p227 = scmp.lt.s32.totalorder %s16, 3
      // Predicated region
      $region37: #{tpu_custom_call.1} parent=5 // pred_check
        %p228 = pneg %p227
      $region38: #{tpu_custom_call.1} parent=5 // pred_check_branch
        %230 = sbr.rel (%p228) target = $region40
      $region39: #{tpu_custom_call.1} parent=5 // pred_region
        // Predicated region
        $region41: #{tpu_custom_call.1} parent=39 // pred_check
          %p231 = pneg %p36
        $region42: #{tpu_custom_call.1} parent=39 // pred_check_branch
          %233 = sbr.rel (%p231) target = $region44
        $region43: #{tpu_custom_call.1} parent=39 // pred_region
          %s234 = smul.u32 32, %s16
          %p235 = scmp.lt.s32.totalorder %s234, 95
          %s236 = scalar_select %p235, %s234, 95
          %s237 = smul.addr %s236, 8
          %s238 = scalar_lea.vmem %s0, %s237
          %s239 = smul.u32 32, %s16
        $region44: #{tpu_custom_call.1} parent=39 // pred_fallthru
          _
      $region40: #{tpu_custom_call.1} parent=5 // pred_fallthru
        _
      %p240 = scmp.le.s32.totalorder 1, %s16
      %p241 = scmp.lt.s32.totalorder %s16, 4
      %p242 = pnand %p240, %p241
      %p243 = pneg %p242
      // Predicated region
      $region45: #{tpu_custom_call.1} parent=5 // pred_check
        _
      $region46: #{tpu_custom_call.1} parent=5 // pred_check_branch
        %245 = sbr.rel (%p242) target = $region48
      $region47: #{tpu_custom_call.1} parent=5 // pred_region
        %s246 = ssub.s32 %s16, 1
        %s247 = smul.u32 32, %s21
        %p248 = scmp.lt.s32.totalorder %s247, 95
        %s249 = scalar_select %p248, %s247, 95
        %s250 = smul.addr %s249, 8
        %s251 = scalar_lea.vmem %s0, %s250
        %p252 = pneg %p42
        %p253 = pneg %p39
        %p254 = pneg %p63
        %p255 = pneg %p60
        %p256 = pneg %p84
        %p257 = pneg %p81
        %p258 = pneg %p105
        %p259 = pneg %p102
        %p260 = pneg %p126
        %p261 = pneg %p123
        %p262 = pneg %p147
        %p263 = pneg %p144
        %p264 = pneg %p168
        %p265 = pneg %p165
        %p266 = pneg %p194
        %p267 = pneg %p191
        %s268 = sand.u32 %s181, 1
        %s269 = scalar_lea.sflag [#allocation3], %s268
        %s270 = sand.u32 %s181, 1
        %s271 = smul.addr %s270, 256
        %s272 = scalar_lea.vmem [#allocation2], %s271
        %s273 = smul.u32 32, %s21
        %p274 = scmp.lt.s32.totalorder %s273, 95
        %s275 = scalar_select %p274, %s273, 95
        %s276 = smul.addr %s275, 8
        %s277 = scalar_lea.vmem %s0, %s276
        %s278 = smul.u32 32, %s21
        %s279 = smul.u32 32, %s21
        %v281 = vld [vmem:[%s277] sm:$0xff]
        %v282 = vld [vmem:[%s277 + $0x8] sm:$0xff]
        %v283 = vld [vmem:[%s277 + $0x10] sm:$0xff]
        %v284 = vld [vmem:[%s277 + $0x18] sm:$0xff]
        %v285 = vld [vmem:[%s277 + $0x20] sm:$0xff]
        %v286 = vld [vmem:[%s277 + $0x28] sm:$0xff]
        %v287 = vld [vmem:[%s277 + $0x30] sm:$0xff]
        %v288 = vld [vmem:[%s277 + $0x38] sm:$0xff]
        %v289 = vld [vmem:[%s277 + $0x40] sm:$0xff]
        %v290 = vld [vmem:[%s277 + $0x48] sm:$0xff]
        %v291 = vld [vmem:[%s277 + $0x50] sm:$0xff]
        %v292 = vld [vmem:[%s277 + $0x58] sm:$0xff]
        %v293 = vld [vmem:[%s277 + $0x60] sm:$0xff]
        %v294 = vld [vmem:[%s277 + $0x68] sm:$0xff]
        %v295 = vld [vmem:[%s277 + $0x70] sm:$0xff]
        %v296 = vld [vmem:[%s277 + $0x78] sm:$0xff]
        %v297 = vld [vmem:[%s277 + $0x80] sm:$0xff]
        %v298 = vld [vmem:[%s277 + $0x88] sm:$0xff]
        %v299 = vld [vmem:[%s277 + $0x90] sm:$0xff]
        %v300 = vld [vmem:[%s277 + $0x98] sm:$0xff]
        %v301 = vld [vmem:[%s277 + $0xa0] sm:$0xff]
        %v302 = vld [vmem:[%s277 + $0xa8] sm:$0xff]
        %v303 = vld [vmem:[%s277 + $0xb0] sm:$0xff]
        %v304 = vld [vmem:[%s277 + $0xb8] sm:$0xff]
        %v305 = vld [vmem:[%s277 + $0xc0] sm:$0xff]
        %v306 = vld [vmem:[%s277 + $0xc8] sm:$0xff]
        %v307 = vld [vmem:[%s277 + $0xd0] sm:$0xff]
        %v308 = vld [vmem:[%s277 + $0xd8] sm:$0xff]
        %v309 = vld [vmem:[%s277 + $0xe0] sm:$0xff]
        %v310 = vld [vmem:[%s277 + $0xe8] sm:$0xff]
        %v311 = vld [vmem:[%s277 + $0xf0] sm:$0xff]
        %v312 = vld [vmem:[%s277 + $0xf8] sm:$0xff]
        %v313 = vld [vmem:[%s1] ss:$8 sm:$0x3]
        %315 = vset.pattern.permute.xlu0 0
        %316 = vperm.xlu0 %315, %v281
        %v317 = vpop.permute.xlu0 %316
        %320 = vset.pattern.permute.xlu0 0
        %321 = vperm.xlu0 %320, %v282
        %v322 = vpop.permute.xlu0 %321
        %325 = vset.pattern.permute.xlu0 0
        %326 = vperm.xlu0 %325, %v283
        %v327 = vpop.permute.xlu0 %326
        %330 = vset.pattern.permute.xlu0 0
        %331 = vperm.xlu0 %330, %v284
        %v332 = vpop.permute.xlu0 %331
        %335 = vset.pattern.permute.xlu0 0
        %336 = vperm.xlu0 %335, %v285
        %v337 = vpop.permute.xlu0 %336
        %340 = vset.pattern.permute.xlu0 0
        %341 = vperm.xlu0 %340, %v286
        %v342 = vpop.permute.xlu0 %341
        %345 = vset.pattern.permute.xlu0 0
        %346 = vperm.xlu0 %345, %v287
        %v347 = vpop.permute.xlu0 %346
        %350 = vset.pattern.permute.xlu0 0
        %351 = vperm.xlu0 %350, %v288
        %v352 = vpop.permute.xlu0 %351
        %355 = vset.pattern.permute.xlu0 0
        %356 = vperm.xlu0 %355, %v289
        %v357 = vpop.permute.xlu0 %356
        %360 = vset.pattern.permute.xlu0 0
        %361 = vperm.xlu0 %360, %v290
        %v362 = vpop.permute.xlu0 %361
        %365 = vset.pattern.permute.xlu0 0
        %366 = vperm.xlu0 %365, %v291
        %v367 = vpop.permute.xlu0 %366
        %370 = vset.pattern.permute.xlu0 0
        %371 = vperm.xlu0 %370, %v292
        %v372 = vpop.permute.xlu0 %371
        %375 = vset.pattern.permute.xlu0 0
        %376 = vperm.xlu0 %375, %v293
        %v377 = vpop.permute.xlu0 %376
        %380 = vset.pattern.permute.xlu0 0
        %381 = vperm.xlu0 %380, %v294
        %v382 = vpop.permute.xlu0 %381
        %385 = vset.pattern.permute.xlu0 0
        %386 = vperm.xlu0 %385, %v295
        %v387 = vpop.permute.xlu0 %386
        %390 = vset.pattern.permute.xlu0 0
        %391 = vperm.xlu0 %390, %v296
        %v392 = vpop.permute.xlu0 %391
        %395 = vset.pattern.permute.xlu0 0
        %396 = vperm.xlu0 %395, %v297
        %v397 = vpop.permute.xlu0 %396
        %400 = vset.pattern.permute.xlu0 0
        %401 = vperm.xlu0 %400, %v298
        %v402 = vpop.permute.xlu0 %401
        %405 = vset.pattern.permute.xlu0 0
        %406 = vperm.xlu0 %405, %v299
        %v407 = vpop.permute.xlu0 %406
        %410 = vset.pattern.permute.xlu0 0
        %411 = vperm.xlu0 %410, %v300
        %v412 = vpop.permute.xlu0 %411
        %415 = vset.pattern.permute.xlu0 0
        %416 = vperm.xlu0 %415, %v301
        %v417 = vpop.permute.xlu0 %416
        %420 = vset.pattern.permute.xlu0 0
        %421 = vperm.xlu0 %420, %v302
        %v422 = vpop.permute.xlu0 %421
        %425 = vset.pattern.permute.xlu0 0
        %426 = vperm.xlu0 %425, %v303
        %v427 = vpop.permute.xlu0 %426
        %430 = vset.pattern.permute.xlu0 0
        %431 = vperm.xlu0 %430, %v304
        %v432 = vpop.permute.xlu0 %431
        %435 = vset.pattern.permute.xlu0 0
        %436 = vperm.xlu0 %435, %v305
        %v437 = vpop.permute.xlu0 %436
        %440 = vset.pattern.permute.xlu0 0
        %441 = vperm.xlu0 %440, %v306
        %v442 = vpop.permute.xlu0 %441
        %445 = vset.pattern.permute.xlu0 0
        %446 = vperm.xlu0 %445, %v307
        %v447 = vpop.permute.xlu0 %446
        %450 = vset.pattern.permute.xlu0 0
        %451 = vperm.xlu0 %450, %v308
        %v452 = vpop.permute.xlu0 %451
        %455 = vset.pattern.permute.xlu0 0
        %456 = vperm.xlu0 %455, %v309
        %v457 = vpop.permute.xlu0 %456
        %460 = vset.pattern.permute.xlu0 0
        %461 = vperm.xlu0 %460, %v310
        %v462 = vpop.permute.xlu0 %461
        %465 = vset.pattern.permute.xlu0 0
        %466 = vperm.xlu0 %465, %v311
        %v467 = vpop.permute.xlu0 %466
        %470 = vset.pattern.permute.xlu0 0
        %471 = vperm.xlu0 %470, %v312
        %v472 = vpop.permute.xlu0 %471
        %v475 = vlaneseq
        %v476 = vshrl.u32 %v475, 7
        %v477 = vsub.s32 0, %v476
        %v478 = vrot.slane %v313, %v477
        %v479 = vlaneseq
        %v480 = vshrl.u32 %v479, 7
        %v481 = vsub.s32 1, %v480
        %v482 = vrot.slane %v313, %v481
        %v485 = vmul.f32 %v317, %v478
        %v486 = vmul.f32 %v317, %v482
        %v487 = vmul.f32 %v322, %v478
        %v488 = vmul.f32 %v322, %v482
        %v489 = vmul.f32 %v327, %v478
        %v490 = vmul.f32 %v327, %v482
        %v491 = vmul.f32 %v332, %v478
        %v492 = vmul.f32 %v332, %v482
        %v493 = vmul.f32 %v337, %v478
        %v494 = vmul.f32 %v337, %v482
        %v495 = vmul.f32 %v342, %v478
        %v496 = vmul.f32 %v342, %v482
        %v497 = vmul.f32 %v347, %v478
        %v498 = vmul.f32 %v347, %v482
        %v499 = vmul.f32 %v352, %v478
        %v500 = vmul.f32 %v352, %v482
        %v501 = vmul.f32 %v357, %v478
        %v502 = vmul.f32 %v357, %v482
        %v503 = vmul.f32 %v362, %v478
        %v504 = vmul.f32 %v362, %v482
        %v505 = vmul.f32 %v367, %v478
        %v506 = vmul.f32 %v367, %v482
        %v507 = vmul.f32 %v372, %v478
        %v508 = vmul.f32 %v372, %v482
        %v509 = vmul.f32 %v377, %v478
        %v510 = vmul.f32 %v377, %v482
        %v511 = vmul.f32 %v382, %v478
        %v512 = vmul.f32 %v382, %v482
        %v513 = vmul.f32 %v387, %v478
        %v514 = vmul.f32 %v387, %v482
        %v515 = vmul.f32 %v392, %v478
        %v516 = vmul.f32 %v392, %v482
        %v517 = vmul.f32 %v397, %v478
        %v518 = vmul.f32 %v397, %v482
        %v519 = vmul.f32 %v402, %v478
        %v520 = vmul.f32 %v402, %v482
        %v521 = vmul.f32 %v407, %v478
        %v522 = vmul.f32 %v407, %v482
        %v523 = vmul.f32 %v412, %v478
        %v524 = vmul.f32 %v412, %v482
        %v525 = vmul.f32 %v417, %v478
        %v526 = vmul.f32 %v417, %v482
        %v527 = vmul.f32 %v422, %v478
        %v528 = vmul.f32 %v422, %v482
        %v529 = vmul.f32 %v427, %v478
        %v530 = vmul.f32 %v427, %v482
        %v531 = vmul.f32 %v432, %v478
        %v532 = vmul.f32 %v432, %v482
        %v533 = vmul.f32 %v437, %v478
        %v534 = vmul.f32 %v437, %v482
        %v535 = vmul.f32 %v442, %v478
        %v536 = vmul.f32 %v442, %v482
        %v537 = vmul.f32 %v447, %v478
        %v538 = vmul.f32 %v447, %v482
        %v539 = vmul.f32 %v452, %v478
        %v540 = vmul.f32 %v452, %v482
        %v541 = vmul.f32 %v457, %v478
        %v542 = vmul.f32 %v457, %v482
        %v543 = vmul.f32 %v462, %v478
        %v544 = vmul.f32 %v462, %v482
        %v545 = vmul.f32 %v467, %v478
        %v546 = vmul.f32 %v467, %v482
        %v547 = vmul.f32 %v472, %v478
        %v548 = vmul.f32 %v472, %v482
        %s549 = scalar_lea.vmem %s1, 1
        %v550 = vld [vmem:[%s549] ss:$8 sm:$0x3]
        %551 = vset.pattern.permute.xlu0 1
        %552 = vperm.xlu0 %551, %v281
        %v553 = vpop.permute.xlu0 %552
        %555 = vset.pattern.permute.xlu0 1
        %556 = vperm.xlu0 %555, %v282
        %v557 = vpop.permute.xlu0 %556
        %559 = vset.pattern.permute.xlu0 1
        %560 = vperm.xlu0 %559, %v283
        %v561 = vpop.permute.xlu0 %560
        %563 = vset.pattern.permute.xlu0 1
        %564 = vperm.xlu0 %563, %v284
        %v565 = vpop.permute.xlu0 %564
        %567 = vset.pattern.permute.xlu0 1
        %568 = vperm.xlu0 %567, %v285
        %v569 = vpop.permute.xlu0 %568
        %571 = vset.pattern.permute.xlu0 1
        %572 = vperm.xlu0 %571, %v286
        %v573 = vpop.permute.xlu0 %572
        %575 = vset.pattern.permute.xlu0 1
        %576 = vperm.xlu0 %575, %v287
        %v577 = vpop.permute.xlu0 %576
        %579 = vset.pattern.permute.xlu0 1
        %580 = vperm.xlu0 %579, %v288
        %v581 = vpop.permute.xlu0 %580
        %583 = vset.pattern.permute.xlu0 1
        %584 = vperm.xlu0 %583, %v289
        %v585 = vpop.permute.xlu0 %584
        %587 = vset.pattern.permute.xlu0 1
        %588 = vperm.xlu0 %587, %v290
        %v589 = vpop.permute.xlu0 %588
        %591 = vset.pattern.permute.xlu0 1
        %592 = vperm.xlu0 %591, %v291
        %v593 = vpop.permute.xlu0 %592
        %595 = vset.pattern.permute.xlu0 1
        %596 = vperm.xlu0 %595, %v292
        %v597 = vpop.permute.xlu0 %596
        %599 = vset.pattern.permute.xlu0 1
        %600 = vperm.xlu0 %599, %v293
        %v601 = vpop.permute.xlu0 %600
        %603 = vset.pattern.permute.xlu0 1
        %604 = vperm.xlu0 %603, %v294
        %v605 = vpop.permute.xlu0 %604
        %607 = vset.pattern.permute.xlu0 1
        %608 = vperm.xlu0 %607, %v295
        %v609 = vpop.permute.xlu0 %608
        %611 = vset.pattern.permute.xlu0 1
        %612 = vperm.xlu0 %611, %v296
        %v613 = vpop.permute.xlu0 %612
        %615 = vset.pattern.permute.xlu0 1
        %616 = vperm.xlu0 %615, %v297
        %v617 = vpop.permute.xlu0 %616
        %619 = vset.pattern.permute.xlu0 1
        %620 = vperm.xlu0 %619, %v298
        %v621 = vpop.permute.xlu0 %620
        %623 = vset.pattern.permute.xlu0 1
        %624 = vperm.xlu0 %623, %v299
        %v625 = vpop.permute.xlu0 %624
        %627 = vset.pattern.permute.xlu0 1
        %628 = vperm.xlu0 %627, %v300
        %v629 = vpop.permute.xlu0 %628
        %631 = vset.pattern.permute.xlu0 1
        %632 = vperm.xlu0 %631, %v301
        %v633 = vpop.permute.xlu0 %632
        %635 = vset.pattern.permute.xlu0 1
        %636 = vperm.xlu0 %635, %v302
        %v637 = vpop.permute.xlu0 %636
        %639 = vset.pattern.permute.xlu0 1
        %640 = vperm.xlu0 %639, %v303
        %v641 = vpop.permute.xlu0 %640
        %643 = vset.pattern.permute.xlu0 1
        %644 = vperm.xlu0 %643, %v304
        %v645 = vpop.permute.xlu0 %644
        %647 = vset.pattern.permute.xlu0 1
        %648 = vperm.xlu0 %647, %v305
        %v649 = vpop.permute.xlu0 %648
        %651 = vset.pattern.permute.xlu0 1
        %652 = vperm.xlu0 %651, %v306
        %v653 = vpop.permute.xlu0 %652
        %655 = vset.pattern.permute.xlu0 1
        %656 = vperm.xlu0 %655, %v307
        %v657 = vpop.permute.xlu0 %656
        %659 = vset.pattern.permute.xlu0 1
        %660 = vperm.xlu0 %659, %v308
        %v661 = vpop.permute.xlu0 %660
        %663 = vset.pattern.permute.xlu0 1
        %664 = vperm.xlu0 %663, %v309
        %v665 = vpop.permute.xlu0 %664
        %667 = vset.pattern.permute.xlu0 1
        %668 = vperm.xlu0 %667, %v310
        %v669 = vpop.permute.xlu0 %668
        %671 = vset.pattern.permute.xlu0 1
        %672 = vperm.xlu0 %671, %v311
        %v673 = vpop.permute.xlu0 %672
        %675 = vset.pattern.permute.xlu0 1
        %676 = vperm.xlu0 %675, %v312
        %v677 = vpop.permute.xlu0 %676
        %v680 = vlaneseq
        %v681 = vshrl.u32 %v680, 7
        %v682 = vsub.s32 0, %v681
        %v683 = vrot.slane %v550, %v682
        %v684 = vlaneseq
        %v685 = vshrl.u32 %v684, 7
        %v686 = vsub.s32 1, %v685
        %v687 = vrot.slane %v550, %v686
        %v690 = vmul.f32 %v553, %v683
        %v691 = vmul.f32 %v553, %v687
        %v692 = vmul.f32 %v557, %v683
        %v693 = vmul.f32 %v557, %v687
        %v694 = vmul.f32 %v561, %v683
        %v695 = vmul.f32 %v561, %v687
        %v696 = vmul.f32 %v565, %v683
        %v697 = vmul.f32 %v565, %v687
        %v698 = vmul.f32 %v569, %v683
        %v699 = vmul.f32 %v569, %v687
        %v700 = vmul.f32 %v573, %v683
        %v701 = vmul.f32 %v573, %v687
        %v702 = vmul.f32 %v577, %v683
        %v703 = vmul.f32 %v577, %v687
        %v704 = vmul.f32 %v581, %v683
        %v705 = vmul.f32 %v581, %v687
        %v706 = vmul.f32 %v585, %v683
        %v707 = vmul.f32 %v585, %v687
        %v708 = vmul.f32 %v589, %v683
        %v709 = vmul.f32 %v589, %v687
        %v710 = vmul.f32 %v593, %v683
        %v711 = vmul.f32 %v593, %v687
        %v712 = vmul.f32 %v597, %v683
        %v713 = vmul.f32 %v597, %v687
        %v714 = vmul.f32 %v601, %v683
        %v715 = vmul.f32 %v601, %v687
        %v716 = vmul.f32 %v605, %v683
        %v717 = vmul.f32 %v605, %v687
        %v718 = vmul.f32 %v609, %v683
        %v719 = vmul.f32 %v609, %v687
        %v720 = vmul.f32 %v613, %v683
        %v721 = vmul.f32 %v613, %v687
        %v722 = vmul.f32 %v617, %v683
        %v723 = vmul.f32 %v617, %v687
        %v724 = vmul.f32 %v621, %v683
        %v725 = vmul.f32 %v621, %v687
        %v726 = vmul.f32 %v625, %v683
        %v727 = vmul.f32 %v625, %v687
        %v728 = vmul.f32 %v629, %v683
        %v729 = vmul.f32 %v629, %v687
        %v730 = vmul.f32 %v633, %v683
        %v731 = vmul.f32 %v633, %v687
        %v732 = vmul.f32 %v637, %v683
        %v733 = vmul.f32 %v637, %v687
        %v734 = vmul.f32 %v641, %v683
        %v735 = vmul.f32 %v641, %v687
        %v736 = vmul.f32 %v645, %v683
        %v737 = vmul.f32 %v645, %v687
        %v738 = vmul.f32 %v649, %v683
        %v739 = vmul.f32 %v649, %v687
        %v740 = vmul.f32 %v653, %v683
        %v741 = vmul.f32 %v653, %v687
        %v742 = vmul.f32 %v657, %v683
        %v743 = vmul.f32 %v657, %v687
        %v744 = vmul.f32 %v661, %v683
        %v745 = vmul.f32 %v661, %v687
        %v746 = vmul.f32 %v665, %v683
        %v747 = vmul.f32 %v665, %v687
        %v748 = vmul.f32 %v669, %v683
        %v749 = vmul.f32 %v669, %v687
        %v750 = vmul.f32 %v673, %v683
        %v751 = vmul.f32 %v673, %v687
        %v752 = vmul.f32 %v677, %v683
        %v753 = vmul.f32 %v677, %v687
        %v754 = vadd.f32 %v485, %v690
        %v755 = vadd.f32 %v486, %v691
        %v756 = vadd.f32 %v487, %v692
        %v757 = vadd.f32 %v488, %v693
        %v758 = vadd.f32 %v489, %v694
        %v759 = vadd.f32 %v490, %v695
        %v760 = vadd.f32 %v491, %v696
        %v761 = vadd.f32 %v492, %v697
        %v762 = vadd.f32 %v493, %v698
        %v763 = vadd.f32 %v494, %v699
        %v764 = vadd.f32 %v495, %v700
        %v765 = vadd.f32 %v496, %v701
        %v766 = vadd.f32 %v497, %v702
        %v767 = vadd.f32 %v498, %v703
        %v768 = vadd.f32 %v499, %v704
        %v769 = vadd.f32 %v500, %v705
        %v770 = vadd.f32 %v501, %v706
        %v771 = vadd.f32 %v502, %v707
        %v772 = vadd.f32 %v503, %v708
        %v773 = vadd.f32 %v504, %v709
        %v774 = vadd.f32 %v505, %v710
        %v775 = vadd.f32 %v506, %v711
        %v776 = vadd.f32 %v507, %v712
        %v777 = vadd.f32 %v508, %v713
        %v778 = vadd.f32 %v509, %v714
        %v779 = vadd.f32 %v510, %v715
        %v780 = vadd.f32 %v511, %v716
        %v781 = vadd.f32 %v512, %v717
        %v782 = vadd.f32 %v513, %v718
        %v783 = vadd.f32 %v514, %v719
        %v784 = vadd.f32 %v515, %v720
        %v785 = vadd.f32 %v516, %v721
        %v786 = vadd.f32 %v517, %v722
        %v787 = vadd.f32 %v518, %v723
        %v788 = vadd.f32 %v519, %v724
        %v789 = vadd.f32 %v520, %v725
        %v790 = vadd.f32 %v521, %v726
        %v791 = vadd.f32 %v522, %v727
        %v792 = vadd.f32 %v523, %v728
        %v793 = vadd.f32 %v524, %v729
        %v794 = vadd.f32 %v525, %v730
        %v795 = vadd.f32 %v526, %v731
        %v796 = vadd.f32 %v527, %v732
        %v797 = vadd.f32 %v528, %v733
        %v798 = vadd.f32 %v529, %v734
        %v799 = vadd.f32 %v530, %v735
        %v800 = vadd.f32 %v531, %v736
        %v801 = vadd.f32 %v532, %v737
        %v802 = vadd.f32 %v533, %v738
        %v803 = vadd.f32 %v534, %v739
        %v804 = vadd.f32 %v535, %v740
        %v805 = vadd.f32 %v536, %v741
        %v806 = vadd.f32 %v537, %v742
        %v807 = vadd.f32 %v538, %v743
        %v808 = vadd.f32 %v539, %v744
        %v809 = vadd.f32 %v540, %v745
        %v810 = vadd.f32 %v541, %v746
        %v811 = vadd.f32 %v542, %v747
        %v812 = vadd.f32 %v543, %v748
        %v813 = vadd.f32 %v544, %v749
        %v814 = vadd.f32 %v545, %v750
        %v815 = vadd.f32 %v546, %v751
        %v816 = vadd.f32 %v547, %v752
        %v817 = vadd.f32 %v548, %v753
        %s818 = scalar_lea.vmem %s1, 2
        %v819 = vld [vmem:[%s818] ss:$8 sm:$0x3]
        %820 = vset.pattern.permute.xlu0 2
        %821 = vperm.xlu0 %820, %v281
        %v822 = vpop.permute.xlu0 %821
        %824 = vset.pattern.permute.xlu0 2
        %825 = vperm.xlu0 %824, %v282
        %v826 = vpop.permute.xlu0 %825
        %828 = vset.pattern.permute.xlu0 2
        %829 = vperm.xlu0 %828, %v283
        %v830 = vpop.permute.xlu0 %829
        %832 = vset.pattern.permute.xlu0 2
        %833 = vperm.xlu0 %832, %v284
        %v834 = vpop.permute.xlu0 %833
        %836 = vset.pattern.permute.xlu0 2
        %837 = vperm.xlu0 %836, %v285
        %v838 = vpop.permute.xlu0 %837
        %840 = vset.pattern.permute.xlu0 2
        %841 = vperm.xlu0 %840, %v286
        %v842 = vpop.permute.xlu0 %841
        %844 = vset.pattern.permute.xlu0 2
        %845 = vperm.xlu0 %844, %v287
        %v846 = vpop.permute.xlu0 %845
        %848 = vset.pattern.permute.xlu0 2
        %849 = vperm.xlu0 %848, %v288
        %v850 = vpop.permute.xlu0 %849
        %852 = vset.pattern.permute.xlu0 2
        %853 = vperm.xlu0 %852, %v289
        %v854 = vpop.permute.xlu0 %853
        %856 = vset.pattern.permute.xlu0 2
        %857 = vperm.xlu0 %856, %v290
        %v858 = vpop.permute.xlu0 %857
        %860 = vset.pattern.permute.xlu0 2
        %861 = vperm.xlu0 %860, %v291
        %v862 = vpop.permute.xlu0 %861
        %864 = vset.pattern.permute.xlu0 2
        %865 = vperm.xlu0 %864, %v292
        %v866 = vpop.permute.xlu0 %865
        %868 = vset.pattern.permute.xlu0 2
        %869 = vperm.xlu0 %868, %v293
        %v870 = vpop.permute.xlu0 %869
        %872 = vset.pattern.permute.xlu0 2
        %873 = vperm.xlu0 %872, %v294
        %v874 = vpop.permute.xlu0 %873
        %876 = vset.pattern.permute.xlu0 2
        %877 = vperm.xlu0 %876, %v295
        %v878 = vpop.permute.xlu0 %877
        %880 = vset.pattern.permute.xlu0 2
        %881 = vperm.xlu0 %880, %v296
        %v882 = vpop.permute.xlu0 %881
        %884 = vset.pattern.permute.xlu0 2
        %885 = vperm.xlu0 %884, %v297
        %v886 = vpop.permute.xlu0 %885
        %888 = vset.pattern.permute.xlu0 2
        %889 = vperm.xlu0 %888, %v298
        %v890 = vpop.permute.xlu0 %889
        %892 = vset.pattern.permute.xlu0 2
        %893 = vperm.xlu0 %892, %v299
        %v894 = vpop.permute.xlu0 %893
        %896 = vset.pattern.permute.xlu0 2
        %897 = vperm.xlu0 %896, %v300
        %v898 = vpop.permute.xlu0 %897
        %900 = vset.pattern.permute.xlu0 2
        %901 = vperm.xlu0 %900, %v301
        %v902 = vpop.permute.xlu0 %901
        %904 = vset.pattern.permute.xlu0 2
        %905 = vperm.xlu0 %904, %v302
        %v906 = vpop.permute.xlu0 %905
        %908 = vset.pattern.permute.xlu0 2
        %909 = vperm.xlu0 %908, %v303
        %v910 = vpop.permute.xlu0 %909
        %912 = vset.pattern.permute.xlu0 2
        %913 = vperm.xlu0 %912, %v304
        %v914 = vpop.permute.xlu0 %913
        %916 = vset.pattern.permute.xlu0 2
        %917 = vperm.xlu0 %916, %v305
        %v918 = vpop.permute.xlu0 %917
        %920 = vset.pattern.permute.xlu0 2
        %921 = vperm.xlu0 %920, %v306
        %v922 = vpop.permute.xlu0 %921
        %924 = vset.pattern.permute.xlu0 2
        %925 = vperm.xlu0 %924, %v307
        %v926 = vpop.permute.xlu0 %925
        %928 = vset.pattern.permute.xlu0 2
        %929 = vperm.xlu0 %928, %v308
        %v930 = vpop.permute.xlu0 %929
        %932 = vset.pattern.permute.xlu0 2
        %933 = vperm.xlu0 %932, %v309
        %v934 = vpop.permute.xlu0 %933
        %936 = vset.pattern.permute.xlu0 2
        %937 = vperm.xlu0 %936, %v310
        %v938 = vpop.permute.xlu0 %937
        %940 = vset.pattern.permute.xlu0 2
        %941 = vperm.xlu0 %940, %v311
        %v942 = vpop.permute.xlu0 %941
        %944 = vset.pattern.permute.xlu0 2
        %945 = vperm.xlu0 %944, %v312
        %v946 = vpop.permute.xlu0 %945
        %v949 = vlaneseq
        %v950 = vshrl.u32 %v949, 7
        %v951 = vsub.s32 0, %v950
        %v952 = vrot.slane %v819, %v951
        %v953 = vlaneseq
        %v954 = vshrl.u32 %v953, 7
        %v955 = vsub.s32 1, %v954
        %v956 = vrot.slane %v819, %v955
        %v959 = vmul.f32 %v822, %v952
        %v960 = vmul.f32 %v822, %v956
        %v961 = vmul.f32 %v826, %v952
        %v962 = vmul.f32 %v826, %v956
        %v963 = vmul.f32 %v830, %v952
        %v964 = vmul.f32 %v830, %v956
        %v965 = vmul.f32 %v834, %v952
        %v966 = vmul.f32 %v834, %v956
        %v967 = vmul.f32 %v838, %v952
        %v968 = vmul.f32 %v838, %v956
        %v969 = vmul.f32 %v842, %v952
        %v970 = vmul.f32 %v842, %v956
        %v971 = vmul.f32 %v846, %v952
        %v972 = vmul.f32 %v846, %v956
        %v973 = vmul.f32 %v850, %v952
        %v974 = vmul.f32 %v850, %v956
        %v975 = vmul.f32 %v854, %v952
        %v976 = vmul.f32 %v854, %v956
        %v977 = vmul.f32 %v858, %v952
        %v978 = vmul.f32 %v858, %v956
        %v979 = vmul.f32 %v862, %v952
        %v980 = vmul.f32 %v862, %v956
        %v981 = vmul.f32 %v866, %v952
        %v982 = vmul.f32 %v866, %v956
        %v983 = vmul.f32 %v870, %v952
        %v984 = vmul.f32 %v870, %v956
        %v985 = vmul.f32 %v874, %v952
        %v986 = vmul.f32 %v874, %v956
        %v987 = vmul.f32 %v878, %v952
        %v988 = vmul.f32 %v878, %v956
        %v989 = vmul.f32 %v882, %v952
        %v990 = vmul.f32 %v882, %v956
        %v991 = vmul.f32 %v886, %v952
        %v992 = vmul.f32 %v886, %v956
        %v993 = vmul.f32 %v890, %v952
        %v994 = vmul.f32 %v890, %v956
        %v995 = vmul.f32 %v894, %v952
        %v996 = vmul.f32 %v894, %v956
        %v997 = vmul.f32 %v898, %v952
        %v998 = vmul.f32 %v898, %v956
        %v999 = vmul.f32 %v902, %v952
        %v1000 = vmul.f32 %v902, %v956
        %v1001 = vmul.f32 %v906, %v952
        %v1002 = vmul.f32 %v906, %v956
        %v1003 = vmul.f32 %v910, %v952
        %v1004 = vmul.f32 %v910, %v956
        %v1005 = vmul.f32 %v914, %v952
        %v1006 = vmul.f32 %v914, %v956
        %v1007 = vmul.f32 %v918, %v952
        %v1008 = vmul.f32 %v918, %v956
        %v1009 = vmul.f32 %v922, %v952
        %v1010 = vmul.f32 %v922, %v956
        %v1011 = vmul.f32 %v926, %v952
        %v1012 = vmul.f32 %v926, %v956
        %v1013 = vmul.f32 %v930, %v952
        %v1014 = vmul.f32 %v930, %v956
        %v1015 = vmul.f32 %v934, %v952
        %v1016 = vmul.f32 %v934, %v956
        %v1017 = vmul.f32 %v938, %v952
        %v1018 = vmul.f32 %v938, %v956
        %v1019 = vmul.f32 %v942, %v952
        %v1020 = vmul.f32 %v942, %v956
        %v1021 = vmul.f32 %v946, %v952
        %v1022 = vmul.f32 %v946, %v956
        %v1023 = vadd.f32 %v754, %v959
        %v1024 = vadd.f32 %v755, %v960
        %v1025 = vadd.f32 %v756, %v961
        %v1026 = vadd.f32 %v757, %v962
        %v1027 = vadd.f32 %v758, %v963
        %v1028 = vadd.f32 %v759, %v964
        %v1029 = vadd.f32 %v760, %v965
        %v1030 = vadd.f32 %v761, %v966
        %v1031 = vadd.f32 %v762, %v967
        %v1032 = vadd.f32 %v763, %v968
        %v1033 = vadd.f32 %v764, %v969
        %v1034 = vadd.f32 %v765, %v970
        %v1035 = vadd.f32 %v766, %v971
        %v1036 = vadd.f32 %v767, %v972
        %v1037 = vadd.f32 %v768, %v973
        %v1038 = vadd.f32 %v769, %v974
        %v1039 = vadd.f32 %v770, %v975
        %v1040 = vadd.f32 %v771, %v976
        %v1041 = vadd.f32 %v772, %v977
        %v1042 = vadd.f32 %v773, %v978
        %v1043 = vadd.f32 %v774, %v979
        %v1044 = vadd.f32 %v775, %v980
        %v1045 = vadd.f32 %v776, %v981
        %v1046 = vadd.f32 %v777, %v982
        %v1047 = vadd.f32 %v778, %v983
        %v1048 = vadd.f32 %v779, %v984
        %v1049 = vadd.f32 %v780, %v985
        %v1050 = vadd.f32 %v781, %v986
        %v1051 = vadd.f32 %v782, %v987
        %v1052 = vadd.f32 %v783, %v988
        %v1053 = vadd.f32 %v784, %v989
        %v1054 = vadd.f32 %v785, %v990
        %v1055 = vadd.f32 %v786, %v991
        %v1056 = vadd.f32 %v787, %v992
        %v1057 = vadd.f32 %v788, %v993
        %v1058 = vadd.f32 %v789, %v994
        %v1059 = vadd.f32 %v790, %v995
        %v1060 = vadd.f32 %v791, %v996
        %v1061 = vadd.f32 %v792, %v997
        %v1062 = vadd.f32 %v793, %v998
        %v1063 = vadd.f32 %v794, %v999
        %v1064 = vadd.f32 %v795, %v1000
        %v1065 = vadd.f32 %v796, %v1001
        %v1066 = vadd.f32 %v797, %v1002
        %v1067 = vadd.f32 %v798, %v1003
        %v1068 = vadd.f32 %v799, %v1004
        %v1069 = vadd.f32 %v800, %v1005
        %v1070 = vadd.f32 %v801, %v1006
        %v1071 = vadd.f32 %v802, %v1007
        %v1072 = vadd.f32 %v803, %v1008
        %v1073 = vadd.f32 %v804, %v1009
        %v1074 = vadd.f32 %v805, %v1010
        %v1075 = vadd.f32 %v806, %v1011
        %v1076 = vadd.f32 %v807, %v1012
        %v1077 = vadd.f32 %v808, %v1013
        %v1078 = vadd.f32 %v809, %v1014
        %v1079 = vadd.f32 %v810, %v1015
        %v1080 = vadd.f32 %v811, %v1016
        %v1081 = vadd.f32 %v812, %v1017
        %v1082 = vadd.f32 %v813, %v1018
        %v1083 = vadd.f32 %v814, %v1019
        %v1084 = vadd.f32 %v815, %v1020
        %v1085 = vadd.f32 %v816, %v1021
        %v1086 = vadd.f32 %v817, %v1022
        %v1087 = vld [vmem:[%s2] sm:$0x3]
        %v1089 = vlaneseq
        %v1090 = vshrl.u32 %v1089, 7
        %v1091 = vsub.s32 0, %v1090
        %v1092 = vrot.slane %v1087, %v1091
        %v1093 = vlaneseq
        %v1094 = vshrl.u32 %v1093, 7
        %v1095 = vsub.s32 1, %v1094
        %v1096 = vrot.slane %v1087, %v1095
        %v1099 = vadd.f32 %v1023, %v1092
        %v1100 = vadd.f32 %v1024, %v1096
        %v1101 = vadd.f32 %v1025, %v1092
        %v1102 = vadd.f32 %v1026, %v1096
        %v1103 = vadd.f32 %v1027, %v1092
        %v1104 = vadd.f32 %v1028, %v1096
        %v1105 = vadd.f32 %v1029, %v1092
        %v1106 = vadd.f32 %v1030, %v1096
        %v1107 = vadd.f32 %v1031, %v1092
        %v1108 = vadd.f32 %v1032, %v1096
        %v1109 = vadd.f32 %v1033, %v1092
        %v1110 = vadd.f32 %v1034, %v1096
        %v1111 = vadd.f32 %v1035, %v1092
        %v1112 = vadd.f32 %v1036, %v1096
        %v1113 = vadd.f32 %v1037, %v1092
        %v1114 = vadd.f32 %v1038, %v1096
        %v1115 = vadd.f32 %v1039, %v1092
        %v1116 = vadd.f32 %v1040, %v1096
        %v1117 = vadd.f32 %v1041, %v1092
        %v1118 = vadd.f32 %v1042, %v1096
        %v1119 = vadd.f32 %v1043, %v1092
        %v1120 = vadd.f32 %v1044, %v1096
        %v1121 = vadd.f32 %v1045, %v1092
        %v1122 = vadd.f32 %v1046, %v1096
        %v1123 = vadd.f32 %v1047, %v1092
        %v1124 = vadd.f32 %v1048, %v1096
        %v1125 = vadd.f32 %v1049, %v1092
        %v1126 = vadd.f32 %v1050, %v1096
        %v1127 = vadd.f32 %v1051, %v1092
        %v1128 = vadd.f32 %v1052, %v1096
        %v1129 = vadd.f32 %v1053, %v1092
        %v1130 = vadd.f32 %v1054, %v1096
        %v1131 = vadd.f32 %v1055, %v1092
        %v1132 = vadd.f32 %v1056, %v1096
        %v1133 = vadd.f32 %v1057, %v1092
        %v1134 = vadd.f32 %v1058, %v1096
        %v1135 = vadd.f32 %v1059, %v1092
        %v1136 = vadd.f32 %v1060, %v1096
        %v1137 = vadd.f32 %v1061, %v1092
        %v1138 = vadd.f32 %v1062, %v1096
        %v1139 = vadd.f32 %v1063, %v1092
        %v1140 = vadd.f32 %v1064, %v1096
        %v1141 = vadd.f32 %v1065, %v1092
        %v1142 = vadd.f32 %v1066, %v1096
        %v1143 = vadd.f32 %v1067, %v1092
        %v1144 = vadd.f32 %v1068, %v1096
        %v1145 = vadd.f32 %v1069, %v1092
        %v1146 = vadd.f32 %v1070, %v1096
        %v1147 = vadd.f32 %v1071, %v1092
        %v1148 = vadd.f32 %v1072, %v1096
        %v1149 = vadd.f32 %v1073, %v1092
        %v1150 = vadd.f32 %v1074, %v1096
        %v1151 = vadd.f32 %v1075, %v1092
        %v1152 = vadd.f32 %v1076, %v1096
        %v1153 = vadd.f32 %v1077, %v1092
        %v1154 = vadd.f32 %v1078, %v1096
        %v1155 = vadd.f32 %v1079, %v1092
        %v1156 = vadd.f32 %v1080, %v1096
        %v1157 = vadd.f32 %v1081, %v1092
        %v1158 = vadd.f32 %v1082, %v1096
        %v1159 = vadd.f32 %v1083, %v1092
        %v1160 = vadd.f32 %v1084, %v1096
        %v1161 = vadd.f32 %v1085, %v1092
        %v1162 = vadd.f32 %v1086, %v1096
        %v1163 = vmax.f32 %v1099, 0.0
        %v1164 = vmax.f32 %v1100, 0.0
        %v1165 = vmax.f32 %v1101, 0.0
        %v1166 = vmax.f32 %v1102, 0.0
        %v1167 = vmax.f32 %v1103, 0.0
        %v1168 = vmax.f32 %v1104, 0.0
        %v1169 = vmax.f32 %v1105, 0.0
        %v1170 = vmax.f32 %v1106, 0.0
        %v1171 = vmax.f32 %v1107, 0.0
        %v1172 = vmax.f32 %v1108, 0.0
        %v1173 = vmax.f32 %v1109, 0.0
        %v1174 = vmax.f32 %v1110, 0.0
        %v1175 = vmax.f32 %v1111, 0.0
        %v1176 = vmax.f32 %v1112, 0.0
        %v1177 = vmax.f32 %v1113, 0.0
        %v1178 = vmax.f32 %v1114, 0.0
        %v1179 = vmax.f32 %v1115, 0.0
        %v1180 = vmax.f32 %v1116, 0.0
        %v1181 = vmax.f32 %v1117, 0.0
        %v1182 = vmax.f32 %v1118, 0.0
        %v1183 = vmax.f32 %v1119, 0.0
        %v1184 = vmax.f32 %v1120, 0.0
        %v1185 = vmax.f32 %v1121, 0.0
        %v1186 = vmax.f32 %v1122, 0.0
        %v1187 = vmax.f32 %v1123, 0.0
        %v1188 = vmax.f32 %v1124, 0.0
        %v1189 = vmax.f32 %v1125, 0.0
        %v1190 = vmax.f32 %v1126, 0.0
        %v1191 = vmax.f32 %v1127, 0.0
        %v1192 = vmax.f32 %v1128, 0.0
        %v1193 = vmax.f32 %v1129, 0.0
        %v1194 = vmax.f32 %v1130, 0.0
        %v1195 = vmax.f32 %v1131, 0.0
        %v1196 = vmax.f32 %v1132, 0.0
        %v1197 = vmax.f32 %v1133, 0.0
        %v1198 = vmax.f32 %v1134, 0.0
        %v1199 = vmax.f32 %v1135, 0.0
        %v1200 = vmax.f32 %v1136, 0.0
        %v1201 = vmax.f32 %v1137, 0.0
        %v1202 = vmax.f32 %v1138, 0.0
        %v1203 = vmax.f32 %v1139, 0.0
        %v1204 = vmax.f32 %v1140, 0.0
        %v1205 = vmax.f32 %v1141, 0.0
        %v1206 = vmax.f32 %v1142, 0.0
        %v1207 = vmax.f32 %v1143, 0.0
        %v1208 = vmax.f32 %v1144, 0.0
        %v1209 = vmax.f32 %v1145, 0.0
        %v1210 = vmax.f32 %v1146, 0.0
        %v1211 = vmax.f32 %v1147, 0.0
        %v1212 = vmax.f32 %v1148, 0.0
        %v1213 = vmax.f32 %v1149, 0.0
        %v1214 = vmax.f32 %v1150, 0.0
        %v1215 = vmax.f32 %v1151, 0.0
        %v1216 = vmax.f32 %v1152, 0.0
        %v1217 = vmax.f32 %v1153, 0.0
        %v1218 = vmax.f32 %v1154, 0.0
        %v1219 = vmax.f32 %v1155, 0.0
        %v1220 = vmax.f32 %v1156, 0.0
        %v1221 = vmax.f32 %v1157, 0.0
        %v1222 = vmax.f32 %v1158, 0.0
        %v1223 = vmax.f32 %v1159, 0.0
        %v1224 = vmax.f32 %v1160, 0.0
        %v1225 = vmax.f32 %v1161, 0.0
        %v1226 = vmax.f32 %v1162, 0.0
        %v1227 = vpack.c.bf16 %v1165, %v1163
        %v1228 = vpack.c.bf16 %v1166, %v1164
        %v1229 = vpack.c.bf16 %v1169, %v1167
        %v1230 = vpack.c.bf16 %v1170, %v1168
        %v1231 = vpack.c.bf16 %v1173, %v1171
        %v1232 = vpack.c.bf16 %v1174, %v1172
        %v1233 = vpack.c.bf16 %v1177, %v1175
        %v1234 = vpack.c.bf16 %v1178, %v1176
        %v1235 = vpack.c.bf16 %v1181, %v1179
        %v1236 = vpack.c.bf16 %v1182, %v1180
        %v1237 = vpack.c.bf16 %v1185, %v1183
        %v1238 = vpack.c.bf16 %v1186, %v1184
        %v1239 = vpack.c.bf16 %v1189, %v1187
        %v1240 = vpack.c.bf16 %v1190, %v1188
        %v1241 = vpack.c.bf16 %v1193, %v1191
        %v1242 = vpack.c.bf16 %v1194, %v1192
        %v1243 = vpack.c.bf16 %v1197, %v1195
        %v1244 = vpack.c.bf16 %v1198, %v1196
        %v1245 = vpack.c.bf16 %v1201, %v1199
        %v1246 = vpack.c.bf16 %v1202, %v1200
        %v1247 = vpack.c.bf16 %v1205, %v1203
        %v1248 = vpack.c.bf16 %v1206, %v1204
        %v1249 = vpack.c.bf16 %v1209, %v1207
        %v1250 = vpack.c.bf16 %v1210, %v1208
        %v1251 = vpack.c.bf16 %v1213, %v1211
        %v1252 = vpack.c.bf16 %v1214, %v1212
        %v1253 = vpack.c.bf16 %v1217, %v1215
        %v1254 = vpack.c.bf16 %v1218, %v1216
        %v1255 = vpack.c.bf16 %v1221, %v1219
        %v1256 = vpack.c.bf16 %v1222, %v1220
        %v1257 = vpack.c.bf16 %v1225, %v1223
        %v1258 = vpack.c.bf16 %v1226, %v1224
        %v1259 = vld [vmem:[%s3] sm:$0xff]
        %v1260 = vld [vmem:[%s3 + $0x8] sm:$0xff]
        %v1261 = vld [vmem:[%s3 + $0x10] sm:$0xff]
        %v1262 = vld [vmem:[%s3 + $0x18] sm:$0xff]
        %v1263 = vld [vmem:[%s3 + $0x20] sm:$0xff]
        %v1264 = vld [vmem:[%s3 + $0x28] sm:$0xff]
        %v1265 = vld [vmem:[%s3 + $0x30] sm:$0xff]
        %v1266 = vld [vmem:[%s3 + $0x38] sm:$0xff]
        %v1267 = vld [vmem:[%s3 + $0x40] sm:$0xff]
        %v1268 = vld [vmem:[%s3 + $0x48] sm:$0xff]
        %v1269 = vld [vmem:[%s3 + $0x50] sm:$0xff]
        %v1270 = vld [vmem:[%s3 + $0x58] sm:$0xff]
        %v1271 = vld [vmem:[%s3 + $0x60] sm:$0xff]
        %v1272 = vld [vmem:[%s3 + $0x68] sm:$0xff]
        %v1273 = vld [vmem:[%s3 + $0x70] sm:$0xff]
        %v1274 = vld [vmem:[%s3 + $0x78] sm:$0xff]
        %v1275 = vld [vmem:[%s3 + $0x80] sm:$0xff]
        %v1276 = vld [vmem:[%s3 + $0x88] sm:$0xff]
        %v1277 = vld [vmem:[%s3 + $0x90] sm:$0xff]
        %v1278 = vld [vmem:[%s3 + $0x98] sm:$0xff]
        %v1279 = vld [vmem:[%s3 + $0xa0] sm:$0xff]
        %v1280 = vld [vmem:[%s3 + $0xa8] sm:$0xff]
        %v1281 = vld [vmem:[%s3 + $0xb0] sm:$0xff]
        %v1282 = vld [vmem:[%s3 + $0xb8] sm:$0xff]
        %v1283 = vld [vmem:[%s3 + $0xc0] sm:$0xff]
        %v1284 = vld [vmem:[%s3 + $0xc8] sm:$0xff]
        %v1285 = vld [vmem:[%s3 + $0xd0] sm:$0xff]
        %v1286 = vld [vmem:[%s3 + $0xd8] sm:$0xff]
        %v1287 = vld [vmem:[%s3 + $0xe0] sm:$0xff]
        %v1288 = vld [vmem:[%s3 + $0xe8] sm:$0xff]
        %v1289 = vld [vmem:[%s3 + $0xf0] sm:$0xff]
        %v1290 = vld [vmem:[%s3 + $0xf8] sm:$0xff]
        %v1291 = vld [vmem:[%s3 + $0x100] sm:$0xff]
        %v1292 = vld [vmem:[%s3 + $0x108] sm:$0xff]
        %v1293 = vld [vmem:[%s3 + $0x110] sm:$0xff]
        %v1294 = vld [vmem:[%s3 + $0x118] sm:$0xff]
        %v1295 = vld [vmem:[%s3 + $0x120] sm:$0xff]
        %v1296 = vld [vmem:[%s3 + $0x128] sm:$0xff]
        %v1297 = vld [vmem:[%s3 + $0x130] sm:$0xff]
        %v1298 = vld [vmem:[%s3 + $0x138] sm:$0xff]
        %v1299 = vld [vmem:[%s3 + $0x140] sm:$0xff]
        %v1300 = vld [vmem:[%s3 + $0x148] sm:$0xff]
        %v1301 = vld [vmem:[%s3 + $0x150] sm:$0xff]
        %v1302 = vld [vmem:[%s3 + $0x158] sm:$0xff]
        %v1303 = vld [vmem:[%s3 + $0x160] sm:$0xff]
        %v1304 = vld [vmem:[%s3 + $0x168] sm:$0xff]
        %v1305 = vld [vmem:[%s3 + $0x170] sm:$0xff]
        %v1306 = vld [vmem:[%s3 + $0x178] sm:$0xff]
        %v1307 = vld [vmem:[%s3 + $0x180] sm:$0xff]
        %v1308 = vld [vmem:[%s3 + $0x188] sm:$0xff]
        %v1309 = vld [vmem:[%s3 + $0x190] sm:$0xff]
        %v1310 = vld [vmem:[%s3 + $0x198] sm:$0xff]
        %v1311 = vld [vmem:[%s3 + $0x1a0] sm:$0xff]
        %v1312 = vld [vmem:[%s3 + $0x1a8] sm:$0xff]
        %v1313 = vld [vmem:[%s3 + $0x1b0] sm:$0xff]
        %v1314 = vld [vmem:[%s3 + $0x1b8] sm:$0xff]
        %v1315 = vld [vmem:[%s3 + $0x1c0] sm:$0xff]
        %v1316 = vld [vmem:[%s3 + $0x1c8] sm:$0xff]
        %v1317 = vld [vmem:[%s3 + $0x1d0] sm:$0xff]
        %v1318 = vld [vmem:[%s3 + $0x1d8] sm:$0xff]
        %v1319 = vld [vmem:[%s3 + $0x1e0] sm:$0xff]
        %v1320 = vld [vmem:[%s3 + $0x1e8] sm:$0xff]
        %v1321 = vld [vmem:[%s3 + $0x1f0] sm:$0xff]
        %v1322 = vld [vmem:[%s3 + $0x1f8] sm:$0xff]
        %v1323 = vld [vmem:[%s4] sm:$0xf]
        %v1325 = vlaneseq
        %v1326 = vshrl.u32 %v1325, 7
        %v1327 = vsub.s32 0, %v1326
        %v1328 = vrot.slane %v1323, %v1327
        %v1329 = vlaneseq
        %v1330 = vshrl.u32 %v1329, 7
        %v1331 = vsub.s32 1, %v1330
        %v1332 = vrot.slane %v1323, %v1331
        %v1333 = vlaneseq
        %v1334 = vshrl.u32 %v1333, 7
        %v1335 = vsub.s32 2, %v1334
        %v1336 = vrot.slane %v1323, %v1335
        %v1337 = vlaneseq
        %v1338 = vshrl.u32 %v1337, 7
        %v1339 = vsub.s32 3, %v1338
        %v1340 = vrot.slane %v1323, %v1339
        %v1409 = vunpack.c.l.b16 %v1259
        %v1410 = vunpack.c.h.b16 %v1259
        %v1411 = vunpack.c.l.b16 %v1260
        %v1412 = vunpack.c.h.b16 %v1260
        %v1413 = vunpack.c.l.b16 %v1261
        %v1414 = vunpack.c.h.b16 %v1261
        %v1415 = vunpack.c.l.b16 %v1262
        %v1416 = vunpack.c.h.b16 %v1262
        %v1417 = vunpack.c.l.b16 %v1263
        %v1418 = vunpack.c.h.b16 %v1263
        %v1419 = vunpack.c.l.b16 %v1264
        %v1420 = vunpack.c.h.b16 %v1264
        %v1421 = vunpack.c.l.b16 %v1265
        %v1422 = vunpack.c.h.b16 %v1265
        %v1423 = vunpack.c.l.b16 %v1266
        %v1424 = vunpack.c.h.b16 %v1266
        %v1425 = vunpack.c.l.b16 %v1267
        %v1426 = vunpack.c.h.b16 %v1267
        %v1427 = vunpack.c.l.b16 %v1268
        %v1428 = vunpack.c.h.b16 %v1268
        %v1429 = vunpack.c.l.b16 %v1269
        %v1430 = vunpack.c.h.b16 %v1269
        %v1431 = vunpack.c.l.b16 %v1270
        %v1432 = vunpack.c.h.b16 %v1270
        %v1433 = vunpack.c.l.b16 %v1271
        %v1434 = vunpack.c.h.b16 %v1271
        %v1435 = vunpack.c.l.b16 %v1272
        %v1436 = vunpack.c.h.b16 %v1272
        %v1437 = vunpack.c.l.b16 %v1273
        %v1438 = vunpack.c.h.b16 %v1273
        %v1439 = vunpack.c.l.b16 %v1274
        %v1440 = vunpack.c.h.b16 %v1274
        %v1441 = vunpack.c.l.b16 %v1275
        %v1442 = vunpack.c.h.b16 %v1275
        %v1443 = vunpack.c.l.b16 %v1276
        %v1444 = vunpack.c.h.b16 %v1276
        %v1445 = vunpack.c.l.b16 %v1277
        %v1446 = vunpack.c.h.b16 %v1277
        %v1447 = vunpack.c.l.b16 %v1278
        %v1448 = vunpack.c.h.b16 %v1278
        %v1449 = vunpack.c.l.b16 %v1279
        %v1450 = vunpack.c.h.b16 %v1279
        %v1451 = vunpack.c.l.b16 %v1280
        %v1452 = vunpack.c.h.b16 %v1280
        %v1453 = vunpack.c.l.b16 %v1281
        %v1454 = vunpack.c.h.b16 %v1281
        %v1455 = vunpack.c.l.b16 %v1282
        %v1456 = vunpack.c.h.b16 %v1282
        %v1457 = vunpack.c.l.b16 %v1283
        %v1458 = vunpack.c.h.b16 %v1283
        %v1459 = vunpack.c.l.b16 %v1284
        %v1460 = vunpack.c.h.b16 %v1284
        %v1461 = vunpack.c.l.b16 %v1285
        %v1462 = vunpack.c.h.b16 %v1285
        %v1463 = vunpack.c.l.b16 %v1286
        %v1464 = vunpack.c.h.b16 %v1286
        %v1465 = vunpack.c.l.b16 %v1287
        %v1466 = vunpack.c.h.b16 %v1287
        %v1467 = vunpack.c.l.b16 %v1288
        %v1468 = vunpack.c.h.b16 %v1288
        %v1469 = vunpack.c.l.b16 %v1289
        %v1470 = vunpack.c.h.b16 %v1289
        %v1471 = vunpack.c.l.b16 %v1290
        %v1472 = vunpack.c.h.b16 %v1290
        %v1473 = vunpack.c.l.b16 %v1291
        %v1474 = vunpack.c.h.b16 %v1291
        %v1475 = vunpack.c.l.b16 %v1292
        %v1476 = vunpack.c.h.b16 %v1292
        %v1477 = vunpack.c.l.b16 %v1293
        %v1478 = vunpack.c.h.b16 %v1293
        %v1479 = vunpack.c.l.b16 %v1294
        %v1480 = vunpack.c.h.b16 %v1294
        %v1481 = vunpack.c.l.b16 %v1295
        %v1482 = vunpack.c.h.b16 %v1295
        %v1483 = vunpack.c.l.b16 %v1296
        %v1484 = vunpack.c.h.b16 %v1296
        %v1485 = vunpack.c.l.b16 %v1297
        %v1486 = vunpack.c.h.b16 %v1297
        %v1487 = vunpack.c.l.b16 %v1298
        %v1488 = vunpack.c.h.b16 %v1298
        %v1489 = vunpack.c.l.b16 %v1299
        %v1490 = vunpack.c.h.b16 %v1299
        %v1491 = vunpack.c.l.b16 %v1300
        %v1492 = vunpack.c.h.b16 %v1300
        %v1493 = vunpack.c.l.b16 %v1301
        %v1494 = vunpack.c.h.b16 %v1301
        %v1495 = vunpack.c.l.b16 %v1302
        %v1496 = vunpack.c.h.b16 %v1302
        %v1497 = vunpack.c.l.b16 %v1303
        %v1498 = vunpack.c.h.b16 %v1303
        %v1499 = vunpack.c.l.b16 %v1304
        %v1500 = vunpack.c.h.b16 %v1304
        %v1501 = vunpack.c.l.b16 %v1305
        %v1502 = vunpack.c.h.b16 %v1305
        %v1503 = vunpack.c.l.b16 %v1306
        %v1504 = vunpack.c.h.b16 %v1306
        %v1505 = vunpack.c.l.b16 %v1307
        %v1506 = vunpack.c.h.b16 %v1307
        %v1507 = vunpack.c.l.b16 %v1308
        %v1508 = vunpack.c.h.b16 %v1308
        %v1509 = vunpack.c.l.b16 %v1309
        %v1510 = vunpack.c.h.b16 %v1309
        %v1511 = vunpack.c.l.b16 %v1310
        %v1512 = vunpack.c.h.b16 %v1310
        %v1513 = vunpack.c.l.b16 %v1311
        %v1514 = vunpack.c.h.b16 %v1311
        %v1515 = vunpack.c.l.b16 %v1312
        %v1516 = vunpack.c.h.b16 %v1312
        %v1517 = vunpack.c.l.b16 %v1313
        %v1518 = vunpack.c.h.b16 %v1313
        %v1519 = vunpack.c.l.b16 %v1314
        %v1520 = vunpack.c.h.b16 %v1314
        %v1521 = vunpack.c.l.b16 %v1315
        %v1522 = vunpack.c.h.b16 %v1315
        %v1523 = vunpack.c.l.b16 %v1316
        %v1524 = vunpack.c.h.b16 %v1316
        %v1525 = vunpack.c.l.b16 %v1317
        %v1526 = vunpack.c.h.b16 %v1317
        %v1527 = vunpack.c.l.b16 %v1318
        %v1528 = vunpack.c.h.b16 %v1318
        %v1529 = vunpack.c.l.b16 %v1319
        %v1530 = vunpack.c.h.b16 %v1319
        %v1531 = vunpack.c.l.b16 %v1320
        %v1532 = vunpack.c.h.b16 %v1320
        %v1533 = vunpack.c.l.b16 %v1321
        %v1534 = vunpack.c.h.b16 %v1321
        %v1535 = vunpack.c.l.b16 %v1322
        %v1536 = vunpack.c.h.b16 %v1322
        %v1537 = vpack.c.b16 %v1413, %v1409
        %v1538 = vpack.c.b16 %v1414, %v1410
        %v1539 = vpack.c.b16 %v1415, %v1411
        %v1540 = vpack.c.b16 %v1416, %v1412
        %v1541 = vpack.c.b16 %v1421, %v1417
        %v1542 = vpack.c.b16 %v1422, %v1418
        %v1543 = vpack.c.b16 %v1423, %v1419
        %v1544 = vpack.c.b16 %v1424, %v1420
        %v1545 = vpack.c.b16 %v1429, %v1425
        %v1546 = vpack.c.b16 %v1430, %v1426
        %v1547 = vpack.c.b16 %v1431, %v1427
        %v1548 = vpack.c.b16 %v1432, %v1428
        %v1549 = vpack.c.b16 %v1437, %v1433
        %v1550 = vpack.c.b16 %v1438, %v1434
        %v1551 = vpack.c.b16 %v1439, %v1435
        %v1552 = vpack.c.b16 %v1440, %v1436
        %v1553 = vpack.c.b16 %v1445, %v1441
        %v1554 = vpack.c.b16 %v1446, %v1442
        %v1555 = vpack.c.b16 %v1447, %v1443
        %v1556 = vpack.c.b16 %v1448, %v1444
        %v1557 = vpack.c.b16 %v1453, %v1449
        %v1558 = vpack.c.b16 %v1454, %v1450
        %v1559 = vpack.c.b16 %v1455, %v1451
        %v1560 = vpack.c.b16 %v1456, %v1452
        %v1561 = vpack.c.b16 %v1461, %v1457
        %v1562 = vpack.c.b16 %v1462, %v1458
        %v1563 = vpack.c.b16 %v1463, %v1459
        %v1564 = vpack.c.b16 %v1464, %v1460
        %v1565 = vpack.c.b16 %v1469, %v1465
        %v1566 = vpack.c.b16 %v1470, %v1466
        %v1567 = vpack.c.b16 %v1471, %v1467
        %v1568 = vpack.c.b16 %v1472, %v1468
        %v1569 = vpack.c.b16 %v1477, %v1473
        %v1570 = vpack.c.b16 %v1478, %v1474
        %v1571 = vpack.c.b16 %v1479, %v1475
        %v1572 = vpack.c.b16 %v1480, %v1476
        %v1573 = vpack.c.b16 %v1485, %v1481
        %v1574 = vpack.c.b16 %v1486, %v1482
        %v1575 = vpack.c.b16 %v1487, %v1483
        %v1576 = vpack.c.b16 %v1488, %v1484
        %v1577 = vpack.c.b16 %v1493, %v1489
        %v1578 = vpack.c.b16 %v1494, %v1490
        %v1579 = vpack.c.b16 %v1495, %v1491
        %v1580 = vpack.c.b16 %v1496, %v1492
        %v1581 = vpack.c.b16 %v1501, %v1497
        %v1582 = vpack.c.b16 %v1502, %v1498
        %v1583 = vpack.c.b16 %v1503, %v1499
        %v1584 = vpack.c.b16 %v1504, %v1500
        %v1585 = vpack.c.b16 %v1509, %v1505
        %v1586 = vpack.c.b16 %v1510, %v1506
        %v1587 = vpack.c.b16 %v1511, %v1507
        %v1588 = vpack.c.b16 %v1512, %v1508
        %v1589 = vpack.c.b16 %v1517, %v1513
        %v1590 = vpack.c.b16 %v1518, %v1514
        %v1591 = vpack.c.b16 %v1519, %v1515
        %v1592 = vpack.c.b16 %v1520, %v1516
        %v1593 = vpack.c.b16 %v1525, %v1521
        %v1594 = vpack.c.b16 %v1526, %v1522
        %v1595 = vpack.c.b16 %v1527, %v1523
        %v1596 = vpack.c.b16 %v1528, %v1524
        %v1597 = vpack.c.b16 %v1533, %v1529
        %v1598 = vpack.c.b16 %v1534, %v1530
        %v1599 = vpack.c.b16 %v1535, %v1531
        %v1600 = vpack.c.b16 %v1536, %v1532
        %1665 = vmatprep.subr.bf16.mxu0 %v1566
        %1666 = vmatpush1.bf16.msra.mxu0 %v1565
        %1667 = vmatprep.subr.bf16.mxu0 %v1562
        %1668 = vmatpush1.bf16.msra.mxu0 %v1561
        %1669 = vmatprep.subr.bf16.mxu0 %v1558
        %1670 = vmatpush1.bf16.msra.mxu0 %v1557
        %1671 = vmatprep.subr.bf16.mxu0 %v1554
        %1672 = vmatpush1.bf16.msra.mxu0 %v1553
        %1673 = vmatprep.subr.bf16.mxu0 %v1550
        %1674 = vmatpush1.bf16.msra.mxu0 %v1549
        %1675 = vmatprep.subr.bf16.mxu0 %v1546
        %1676 = vmatpush1.bf16.msra.mxu0 %v1545
        %1677 = vmatprep.subr.bf16.mxu0 %v1542
        %1678 = vmatpush1.bf16.msra.mxu0 %v1541
        %1679 = vmatprep.subr.bf16.mxu0 %v1538
        %1680 = vmatpush1.bf16.msra.mxu0 %v1537
        %1681 = vmatprep.subr.bf16.mxu0 %v1598
        %1682 = vmatpush2.bf16.msra.mxu0 %v1597
        %1683 = vmatprep.subr.bf16.mxu0 %v1594
        %1684 = vmatpush2.bf16.msra.mxu0 %v1593
        %1685 = vmatprep.subr.bf16.mxu0 %v1590
        %1686 = vmatpush2.bf16.msra.mxu0 %v1589
        %1687 = vmatprep.subr.bf16.mxu0 %v1586
        %1688 = vmatpush2.bf16.msra.mxu0 %v1585
        %1689 = vmatprep.subr.bf16.mxu0 %v1582
        %1690 = vmatpush2.bf16.msra.mxu0 %v1581
        %1691 = vmatprep.subr.bf16.mxu0 %v1578
        %1692 = vmatpush2.bf16.msra.mxu0 %v1577
        %1693 = vmatprep.subr.bf16.mxu0 %v1574
        %1694 = vmatpush2.bf16.msra.mxu0 %v1573
        %1695 = vmatprep.subr.bf16.mxu0 %v1570
        %1696 = vmatpush2.bf16.msra.mxu0 %v1569
        %1697 = vmatprep.mubr.bf16.mxu0 %v1228
        %1698 = vmatmul.mubr.bf16.gmra.mxu0 %v1227
        %v1699 = vpop.f32.mrf.mxu0
        %v1700 = vadd.f32 %v1328, %v1699
        %v1701 = vpop.f32.mrf.mxu0
        %v1702 = vadd.f32 %v1332, %v1701
        %v1703 = vpop.f32.mrf.mxu0
        %v1704 = vadd.f32 %v1328, %v1703
        %v1705 = vpop.f32.mrf.mxu0
        %v1706 = vadd.f32 %v1332, %v1705
        %1707 = vmatprep.mubr.bf16.mxu0 %v1230
        %1708 = vmatmul.mubr.bf16.gmra.mxu0 %v1229
        %v1709 = vpop.f32.mrf.mxu0
        %v1710 = vadd.f32 %v1328, %v1709
        %v1711 = vpop.f32.mrf.mxu0
        %v1712 = vadd.f32 %v1332, %v1711
        %v1713 = vpop.f32.mrf.mxu0
        %v1714 = vadd.f32 %v1328, %v1713
        %v1715 = vpop.f32.mrf.mxu0
        %v1716 = vadd.f32 %v1332, %v1715
        %1717 = vmatprep.mubr.bf16.mxu0 %v1232
        %1718 = vmatmul.mubr.bf16.gmra.mxu0 %v1231
        %v1719 = vpop.f32.mrf.mxu0
        %v1720 = vadd.f32 %v1328, %v1719
        %v1721 = vpop.f32.mrf.mxu0
        %v1722 = vadd.f32 %v1332, %v1721
        %v1723 = vpop.f32.mrf.mxu0
        %v1724 = vadd.f32 %v1328, %v1723
        %v1725 = vpop.f32.mrf.mxu0
        %v1726 = vadd.f32 %v1332, %v1725
        %1727 = vmatprep.mubr.bf16.mxu0 %v1234
        %1728 = vmatmul.mubr.bf16.gmra.mxu0 %v1233
        %v1729 = vpop.f32.mrf.mxu0
        %v1730 = vadd.f32 %v1328, %v1729
        %v1731 = vpop.f32.mrf.mxu0
        %v1732 = vadd.f32 %v1332, %v1731
        %v1733 = vpop.f32.mrf.mxu0
        %v1734 = vadd.f32 %v1328, %v1733
        %v1735 = vpop.f32.mrf.mxu0
        %v1736 = vadd.f32 %v1332, %v1735
        %1737 = vmatprep.mubr.bf16.mxu0 %v1236
        %1738 = vmatmul.mubr.bf16.gmra.mxu0 %v1235
        %v1739 = vpop.f32.mrf.mxu0
        %v1740 = vadd.f32 %v1328, %v1739
        %v1741 = vpop.f32.mrf.mxu0
        %v1742 = vadd.f32 %v1332, %v1741
        %v1743 = vpop.f32.mrf.mxu0
        %v1744 = vadd.f32 %v1328, %v1743
        %v1745 = vpop.f32.mrf.mxu0
        %v1746 = vadd.f32 %v1332, %v1745
        %1747 = vmatprep.mubr.bf16.mxu0 %v1238
        %1748 = vmatmul.mubr.bf16.gmra.mxu0 %v1237
        %v1749 = vpop.f32.mrf.mxu0
        %v1750 = vadd.f32 %v1328, %v1749
        %v1751 = vpop.f32.mrf.mxu0
        %v1752 = vadd.f32 %v1332, %v1751
        %v1753 = vpop.f32.mrf.mxu0
        %v1754 = vadd.f32 %v1328, %v1753
        %v1755 = vpop.f32.mrf.mxu0
        %v1756 = vadd.f32 %v1332, %v1755
        %1757 = vmatprep.mubr.bf16.mxu0 %v1240
        %1758 = vmatmul.mubr.bf16.gmra.mxu0 %v1239
        %v1759 = vpop.f32.mrf.mxu0
        %v1760 = vadd.f32 %v1328, %v1759
        %v1761 = vpop.f32.mrf.mxu0
        %v1762 = vadd.f32 %v1332, %v1761
        %v1763 = vpop.f32.mrf.mxu0
        %v1764 = vadd.f32 %v1328, %v1763
        %v1765 = vpop.f32.mrf.mxu0
        %v1766 = vadd.f32 %v1332, %v1765
        %1767 = vmatprep.mubr.bf16.mxu0 %v1242
        %1768 = vmatmul.mubr.bf16.gmra.mxu0 %v1241
        %v1769 = vpop.f32.mrf.mxu0
        %v1770 = vadd.f32 %v1328, %v1769
        %v1771 = vpop.f32.mrf.mxu0
        %v1772 = vadd.f32 %v1332, %v1771
        %v1773 = vpop.f32.mrf.mxu0
        %v1774 = vadd.f32 %v1328, %v1773
        %v1775 = vpop.f32.mrf.mxu0
        %v1776 = vadd.f32 %v1332, %v1775
        %1777 = vmatprep.mubr.bf16.mxu0 %v1244
        %1778 = vmatmul.mubr.bf16.gmra.mxu0 %v1243
        %v1779 = vpop.f32.mrf.mxu0
        %v1780 = vadd.f32 %v1328, %v1779
        %v1781 = vpop.f32.mrf.mxu0
        %v1782 = vadd.f32 %v1332, %v1781
        %v1783 = vpop.f32.mrf.mxu0
        %v1784 = vadd.f32 %v1328, %v1783
        %v1785 = vpop.f32.mrf.mxu0
        %v1786 = vadd.f32 %v1332, %v1785
        %1787 = vmatprep.mubr.bf16.mxu0 %v1246
        %1788 = vmatmul.mubr.bf16.gmra.mxu0 %v1245
        %v1789 = vpop.f32.mrf.mxu0
        %v1790 = vadd.f32 %v1328, %v1789
        %v1791 = vpop.f32.mrf.mxu0
        %v1792 = vadd.f32 %v1332, %v1791
        %v1793 = vpop.f32.mrf.mxu0
        %v1794 = vadd.f32 %v1328, %v1793
        %v1795 = vpop.f32.mrf.mxu0
        %v1796 = vadd.f32 %v1332, %v1795
        %1797 = vmatprep.mubr.bf16.mxu0 %v1248
        %1798 = vmatmul.mubr.bf16.gmra.mxu0 %v1247
        %v1799 = vpop.f32.mrf.mxu0
        %v1800 = vadd.f32 %v1328, %v1799
        %v1801 = vpop.f32.mrf.mxu0
        %v1802 = vadd.f32 %v1332, %v1801
        %v1803 = vpop.f32.mrf.mxu0
        %v1804 = vadd.f32 %v1328, %v1803
        %v1805 = vpop.f32.mrf.mxu0
        %v1806 = vadd.f32 %v1332, %v1805
        %1807 = vmatprep.mubr.bf16.mxu0 %v1250
        %1808 = vmatmul.mubr.bf16.gmra.mxu0 %v1249
        %v1809 = vpop.f32.mrf.mxu0
        %v1810 = vadd.f32 %v1328, %v1809
        %v1811 = vpop.f32.mrf.mxu0
        %v1812 = vadd.f32 %v1332, %v1811
        %v1813 = vpop.f32.mrf.mxu0
        %v1814 = vadd.f32 %v1328, %v1813
        %v1815 = vpop.f32.mrf.mxu0
        %v1816 = vadd.f32 %v1332, %v1815
        %1817 = vmatprep.mubr.bf16.mxu0 %v1252
        %1818 = vmatmul.mubr.bf16.gmra.mxu0 %v1251
        %v1819 = vpop.f32.mrf.mxu0
        %v1820 = vadd.f32 %v1328, %v1819
        %v1821 = vpop.f32.mrf.mxu0
        %v1822 = vadd.f32 %v1332, %v1821
        %v1823 = vpop.f32.mrf.mxu0
        %v1824 = vadd.f32 %v1328, %v1823
        %v1825 = vpop.f32.mrf.mxu0
        %v1826 = vadd.f32 %v1332, %v1825
        %1827 = vmatprep.mubr.bf16.mxu0 %v1254
        %1828 = vmatmul.mubr.bf16.gmra.mxu0 %v1253
        %v1829 = vpop.f32.mrf.mxu0
        %v1830 = vadd.f32 %v1328, %v1829
        %v1831 = vpop.f32.mrf.mxu0
        %v1832 = vadd.f32 %v1332, %v1831
        %v1833 = vpop.f32.mrf.mxu0
        %v1834 = vadd.f32 %v1328, %v1833
        %v1835 = vpop.f32.mrf.mxu0
        %v1836 = vadd.f32 %v1332, %v1835
        %1837 = vmatprep.mubr.bf16.mxu0 %v1256
        %1838 = vmatmul.mubr.bf16.gmra.mxu0 %v1255
        %v1839 = vpop.f32.mrf.mxu0
        %v1840 = vadd.f32 %v1328, %v1839
        %v1841 = vpop.f32.mrf.mxu0
        %v1842 = vadd.f32 %v1332, %v1841
        %v1843 = vpop.f32.mrf.mxu0
        %v1844 = vadd.f32 %v1328, %v1843
        %v1845 = vpop.f32.mrf.mxu0
        %v1846 = vadd.f32 %v1332, %v1845
        %1847 = vmatprep.mubr.bf16.mxu0 %v1258
        %1848 = vmatmul.mubr.bf16.gmra.mxu0 %v1257
        %v1849 = vpop.f32.mrf.mxu0
        %v1850 = vadd.f32 %v1328, %v1849
        %v1851 = vpop.f32.mrf.mxu0
        %v1852 = vadd.f32 %v1332, %v1851
        %v1853 = vpop.f32.mrf.mxu0
        %v1854 = vadd.f32 %v1328, %v1853
        %v1855 = vpop.f32.mrf.mxu0
        %v1856 = vadd.f32 %v1332, %v1855
        %1857 = vdwg.mxu0
        %1858 = vmatprep.subr.bf16.mxu0 %v1568
        %1859 = vmatpush1.bf16.msra.mxu0 %v1567
        %1860 = vmatprep.subr.bf16.mxu0 %v1564
        %1861 = vmatpush1.bf16.msra.mxu0 %v1563
        %1862 = vmatprep.subr.bf16.mxu0 %v1560
        %1863 = vmatpush1.bf16.msra.mxu0 %v1559
        %1864 = vmatprep.subr.bf16.mxu0 %v1556
        %1865 = vmatpush1.bf16.msra.mxu0 %v1555
        %1866 = vmatprep.subr.bf16.mxu0 %v1552
        %1867 = vmatpush1.bf16.msra.mxu0 %v1551
        %1868 = vmatprep.subr.bf16.mxu0 %v1548
        %1869 = vmatpush1.bf16.msra.mxu0 %v1547
        %1870 = vmatprep.subr.bf16.mxu0 %v1544
        %1871 = vmatpush1.bf16.msra.mxu0 %v1543
        %1872 = vmatprep.subr.bf16.mxu0 %v1540
        %1873 = vmatpush1.bf16.msra.mxu0 %v1539
        %1874 = vmatprep.subr.bf16.mxu0 %v1600
        %1875 = vmatpush2.bf16.msra.mxu0 %v1599
        %1876 = vmatprep.subr.bf16.mxu0 %v1596
        %1877 = vmatpush2.bf16.msra.mxu0 %v1595
        %1878 = vmatprep.subr.bf16.mxu0 %v1592
        %1879 = vmatpush2.bf16.msra.mxu0 %v1591
        %1880 = vmatprep.subr.bf16.mxu0 %v1588
        %1881 = vmatpush2.bf16.msra.mxu0 %v1587
        %1882 = vmatprep.subr.bf16.mxu0 %v1584
        %1883 = vmatpush2.bf16.msra.mxu0 %v1583
        %1884 = vmatprep.subr.bf16.mxu0 %v1580
        %1885 = vmatpush2.bf16.msra.mxu0 %v1579
        %1886 = vmatprep.subr.bf16.mxu0 %v1576
        %1887 = vmatpush2.bf16.msra.mxu0 %v1575
        %1888 = vmatprep.subr.bf16.mxu0 %v1572
        %1889 = vmatpush2.bf16.msra.mxu0 %v1571
        %1890 = vmatprep.mubr.bf16.mxu0 %v1228
        %1891 = vmatmul.mubr.bf16.gmra.mxu0 %v1227
        %v1892 = vpop.f32.mrf.mxu0
        %v1893 = vadd.f32 %v1336, %v1892
        %v1894 = vpop.f32.mrf.mxu0
        %v1895 = vadd.f32 %v1340, %v1894
        %v1896 = vpop.f32.mrf.mxu0
        %v1897 = vadd.f32 %v1336, %v1896
        %v1898 = vpop.f32.mrf.mxu0
        %v1899 = vadd.f32 %v1340, %v1898
        %1900 = vmatprep.mubr.bf16.mxu0 %v1230
        %1901 = vmatmul.mubr.bf16.gmra.mxu0 %v1229
        %v1902 = vpop.f32.mrf.mxu0
        %v1903 = vadd.f32 %v1336, %v1902
        %v1904 = vpop.f32.mrf.mxu0
        %v1905 = vadd.f32 %v1340, %v1904
        %v1906 = vpop.f32.mrf.mxu0
        %v1907 = vadd.f32 %v1336, %v1906
        %v1908 = vpop.f32.mrf.mxu0
        %v1909 = vadd.f32 %v1340, %v1908
        %1910 = vmatprep.mubr.bf16.mxu0 %v1232
        %1911 = vmatmul.mubr.bf16.gmra.mxu0 %v1231
        %v1912 = vpop.f32.mrf.mxu0
        %v1913 = vadd.f32 %v1336, %v1912
        %v1914 = vpop.f32.mrf.mxu0
        %v1915 = vadd.f32 %v1340, %v1914
        %v1916 = vpop.f32.mrf.mxu0
        %v1917 = vadd.f32 %v1336, %v1916
        %v1918 = vpop.f32.mrf.mxu0
        %v1919 = vadd.f32 %v1340, %v1918
        %1920 = vmatprep.mubr.bf16.mxu0 %v1234
        %1921 = vmatmul.mubr.bf16.gmra.mxu0 %v1233
        %v1922 = vpop.f32.mrf.mxu0
        %v1923 = vadd.f32 %v1336, %v1922
        %v1924 = vpop.f32.mrf.mxu0
        %v1925 = vadd.f32 %v1340, %v1924
        %v1926 = vpop.f32.mrf.mxu0
        %v1927 = vadd.f32 %v1336, %v1926
        %v1928 = vpop.f32.mrf.mxu0
        %v1929 = vadd.f32 %v1340, %v1928
        %1930 = vmatprep.mubr.bf16.mxu0 %v1236
        %1931 = vmatmul.mubr.bf16.gmra.mxu0 %v1235
        %v1932 = vpop.f32.mrf.mxu0
        %v1933 = vadd.f32 %v1336, %v1932
        %v1934 = vpop.f32.mrf.mxu0
        %v1935 = vadd.f32 %v1340, %v1934
        %v1936 = vpop.f32.mrf.mxu0
        %v1937 = vadd.f32 %v1336, %v1936
        %v1938 = vpop.f32.mrf.mxu0
        %v1939 = vadd.f32 %v1340, %v1938
        %1940 = vmatprep.mubr.bf16.mxu0 %v1238
        %1941 = vmatmul.mubr.bf16.gmra.mxu0 %v1237
        %v1942 = vpop.f32.mrf.mxu0
        %v1943 = vadd.f32 %v1336, %v1942
        %v1944 = vpop.f32.mrf.mxu0
        %v1945 = vadd.f32 %v1340, %v1944
        %v1946 = vpop.f32.mrf.mxu0
        %v1947 = vadd.f32 %v1336, %v1946
        %v1948 = vpop.f32.mrf.mxu0
        %v1949 = vadd.f32 %v1340, %v1948
        %1950 = vmatprep.mubr.bf16.mxu0 %v1240
        %1951 = vmatmul.mubr.bf16.gmra.mxu0 %v1239
        %v1952 = vpop.f32.mrf.mxu0
        %v1953 = vadd.f32 %v1336, %v1952
        %v1954 = vpop.f32.mrf.mxu0
        %v1955 = vadd.f32 %v1340, %v1954
        %v1956 = vpop.f32.mrf.mxu0
        %v1957 = vadd.f32 %v1336, %v1956
        %v1958 = vpop.f32.mrf.mxu0
        %v1959 = vadd.f32 %v1340, %v1958
        %1960 = vmatprep.mubr.bf16.mxu0 %v1242
        %1961 = vmatmul.mubr.bf16.gmra.mxu0 %v1241
        %v1962 = vpop.f32.mrf.mxu0
        %v1963 = vadd.f32 %v1336, %v1962
        %v1964 = vpop.f32.mrf.mxu0
        %v1965 = vadd.f32 %v1340, %v1964
        %v1966 = vpop.f32.mrf.mxu0
        %v1967 = vadd.f32 %v1336, %v1966
        %v1968 = vpop.f32.mrf.mxu0
        %v1969 = vadd.f32 %v1340, %v1968
        %1970 = vmatprep.mubr.bf16.mxu0 %v1244
        %1971 = vmatmul.mubr.bf16.gmra.mxu0 %v1243
        %v1972 = vpop.f32.mrf.mxu0
        %v1973 = vadd.f32 %v1336, %v1972
        %v1974 = vpop.f32.mrf.mxu0
        %v1975 = vadd.f32 %v1340, %v1974
        %v1976 = vpop.f32.mrf.mxu0
        %v1977 = vadd.f32 %v1336, %v1976
        %v1978 = vpop.f32.mrf.mxu0
        %v1979 = vadd.f32 %v1340, %v1978
        %1980 = vmatprep.mubr.bf16.mxu0 %v1246
        %1981 = vmatmul.mubr.bf16.gmra.mxu0 %v1245
        %v1982 = vpop.f32.mrf.mxu0
        %v1983 = vadd.f32 %v1336, %v1982
        %v1984 = vpop.f32.mrf.mxu0
        %v1985 = vadd.f32 %v1340, %v1984
        %v1986 = vpop.f32.mrf.mxu0
        %v1987 = vadd.f32 %v1336, %v1986
        %v1988 = vpop.f32.mrf.mxu0
        %v1989 = vadd.f32 %v1340, %v1988
        %1990 = vmatprep.mubr.bf16.mxu0 %v1248
        %1991 = vmatmul.mubr.bf16.gmra.mxu0 %v1247
        %v1992 = vpop.f32.mrf.mxu0
        %v1993 = vadd.f32 %v1336, %v1992
        %v1994 = vpop.f32.mrf.mxu0
        %v1995 = vadd.f32 %v1340, %v1994
        %v1996 = vpop.f32.mrf.mxu0
        %v1997 = vadd.f32 %v1336, %v1996
        %v1998 = vpop.f32.mrf.mxu0
        %v1999 = vadd.f32 %v1340, %v1998
        %2000 = vmatprep.mubr.bf16.mxu0 %v1250
        %2001 = vmatmul.mubr.bf16.gmra.mxu0 %v1249
        %v2002 = vpop.f32.mrf.mxu0
        %v2003 = vadd.f32 %v1336, %v2002
        %v2004 = vpop.f32.mrf.mxu0
        %v2005 = vadd.f32 %v1340, %v2004
        %v2006 = vpop.f32.mrf.mxu0
        %v2007 = vadd.f32 %v1336, %v2006
        %v2008 = vpop.f32.mrf.mxu0
        %v2009 = vadd.f32 %v1340, %v2008
        %2010 = vmatprep.mubr.bf16.mxu0 %v1252
        %2011 = vmatmul.mubr.bf16.gmra.mxu0 %v1251
        %v2012 = vpop.f32.mrf.mxu0
        %v2013 = vadd.f32 %v1336, %v2012
        %v2014 = vpop.f32.mrf.mxu0
        %v2015 = vadd.f32 %v1340, %v2014
        %v2016 = vpop.f32.mrf.mxu0
        %v2017 = vadd.f32 %v1336, %v2016
        %v2018 = vpop.f32.mrf.mxu0
        %v2019 = vadd.f32 %v1340, %v2018
        %2020 = vmatprep.mubr.bf16.mxu0 %v1254
        %2021 = vmatmul.mubr.bf16.gmra.mxu0 %v1253
        %v2022 = vpop.f32.mrf.mxu0
        %v2023 = vadd.f32 %v1336, %v2022
        %v2024 = vpop.f32.mrf.mxu0
        %v2025 = vadd.f32 %v1340, %v2024
        %v2026 = vpop.f32.mrf.mxu0
        %v2027 = vadd.f32 %v1336, %v2026
        %v2028 = vpop.f32.mrf.mxu0
        %v2029 = vadd.f32 %v1340, %v2028
        %2030 = vmatprep.mubr.bf16.mxu0 %v1256
        %2031 = vmatmul.mubr.bf16.gmra.mxu0 %v1255
        %v2032 = vpop.f32.mrf.mxu0
        %v2033 = vadd.f32 %v1336, %v2032
        %v2034 = vpop.f32.mrf.mxu0
        %v2035 = vadd.f32 %v1340, %v2034
        %v2036 = vpop.f32.mrf.mxu0
        %v2037 = vadd.f32 %v1336, %v2036
        %v2038 = vpop.f32.mrf.mxu0
        %v2039 = vadd.f32 %v1340, %v2038
        %2040 = vmatprep.mubr.bf16.mxu0 %v1258
        %2041 = vmatmul.mubr.bf16.gmra.mxu0 %v1257
        %v2042 = vpop.f32.mrf.mxu0
        %v2043 = vadd.f32 %v1336, %v2042
        %v2044 = vpop.f32.mrf.mxu0
        %v2045 = vadd.f32 %v1340, %v2044
        %v2046 = vpop.f32.mrf.mxu0
        %v2047 = vadd.f32 %v1336, %v2046
        %v2048 = vpop.f32.mrf.mxu0
        %v2049 = vadd.f32 %v1340, %v2048
        %2050 = vdwg.mxu0
        %v2051 = vmax.f32 %v1700, 0.0
        %v2052 = vmax.f32 %v1702, 0.0
        %v2053 = vmax.f32 %v1893, 0.0
        %v2054 = vmax.f32 %v1895, 0.0
        %v2055 = vmax.f32 %v1704, 0.0
        %v2056 = vmax.f32 %v1706, 0.0
        %v2057 = vmax.f32 %v1897, 0.0
        %v2058 = vmax.f32 %v1899, 0.0
        %v2059 = vmax.f32 %v1710, 0.0
        %v2060 = vmax.f32 %v1712, 0.0
        %v2061 = vmax.f32 %v1903, 0.0
        %v2062 = vmax.f32 %v1905, 0.0
        %v2063 = vmax.f32 %v1714, 0.0
        %v2064 = vmax.f32 %v1716, 0.0
        %v2065 = vmax.f32 %v1907, 0.0
        %v2066 = vmax.f32 %v1909, 0.0
        %v2067 = vmax.f32 %v1720, 0.0
        %v2068 = vmax.f32 %v1722, 0.0
        %v2069 = vmax.f32 %v1913, 0.0
        %v2070 = vmax.f32 %v1915, 0.0
        %v2071 = vmax.f32 %v1724, 0.0
        %v2072 = vmax.f32 %v1726, 0.0
        %v2073 = vmax.f32 %v1917, 0.0
        %v2074 = vmax.f32 %v1919, 0.0
        %v2075 = vmax.f32 %v1730, 0.0
        %v2076 = vmax.f32 %v1732, 0.0
        %v2077 = vmax.f32 %v1923, 0.0
        %v2078 = vmax.f32 %v1925, 0.0
        %v2079 = vmax.f32 %v1734, 0.0
        %v2080 = vmax.f32 %v1736, 0.0
        %v2081 = vmax.f32 %v1927, 0.0
        %v2082 = vmax.f32 %v1929, 0.0
        %v2083 = vmax.f32 %v1740, 0.0
        %v2084 = vmax.f32 %v1742, 0.0
        %v2085 = vmax.f32 %v1933, 0.0
        %v2086 = vmax.f32 %v1935, 0.0
        %v2087 = vmax.f32 %v1744, 0.0
        %v2088 = vmax.f32 %v1746, 0.0
        %v2089 = vmax.f32 %v1937, 0.0
        %v2090 = vmax.f32 %v1939, 0.0
        %v2091 = vmax.f32 %v1750, 0.0
        %v2092 = vmax.f32 %v1752, 0.0
        %v2093 = vmax.f32 %v1943, 0.0
        %v2094 = vmax.f32 %v1945, 0.0
        %v2095 = vmax.f32 %v1754, 0.0
        %v2096 = vmax.f32 %v1756, 0.0
        %v2097 = vmax.f32 %v1947, 0.0
        %v2098 = vmax.f32 %v1949, 0.0
        %v2099 = vmax.f32 %v1760, 0.0
        %v2100 = vmax.f32 %v1762, 0.0
        %v2101 = vmax.f32 %v1953, 0.0
        %v2102 = vmax.f32 %v1955, 0.0
        %v2103 = vmax.f32 %v1764, 0.0
        %v2104 = vmax.f32 %v1766, 0.0
        %v2105 = vmax.f32 %v1957, 0.0
        %v2106 = vmax.f32 %v1959, 0.0
        %v2107 = vmax.f32 %v1770, 0.0
        %v2108 = vmax.f32 %v1772, 0.0
        %v2109 = vmax.f32 %v1963, 0.0
        %v2110 = vmax.f32 %v1965, 0.0
        %v2111 = vmax.f32 %v1774, 0.0
        %v2112 = vmax.f32 %v1776, 0.0
        %v2113 = vmax.f32 %v1967, 0.0
        %v2114 = vmax.f32 %v1969, 0.0
        %v2115 = vmax.f32 %v1780, 0.0
        %v2116 = vmax.f32 %v1782, 0.0
        %v2117 = vmax.f32 %v1973, 0.0
        %v2118 = vmax.f32 %v1975, 0.0
        %v2119 = vmax.f32 %v1784, 0.0
        %v2120 = vmax.f32 %v1786, 0.0
        %v2121 = vmax.f32 %v1977, 0.0
        %v2122 = vmax.f32 %v1979, 0.0
        %v2123 = vmax.f32 %v1790, 0.0
        %v2124 = vmax.f32 %v1792, 0.0
        %v2125 = vmax.f32 %v1983, 0.0
        %v2126 = vmax.f32 %v1985, 0.0
        %v2127 = vmax.f32 %v1794, 0.0
        %v2128 = vmax.f32 %v1796, 0.0
        %v2129 = vmax.f32 %v1987, 0.0
        %v2130 = vmax.f32 %v1989, 0.0
        %v2131 = vmax.f32 %v1800, 0.0
        %v2132 = vmax.f32 %v1802, 0.0
        %v2133 = vmax.f32 %v1993, 0.0
        %v2134 = vmax.f32 %v1995, 0.0
        %v2135 = vmax.f32 %v1804, 0.0
        %v2136 = vmax.f32 %v1806, 0.0
        %v2137 = vmax.f32 %v1997, 0.0
        %v2138 = vmax.f32 %v1999, 0.0
        %v2139 = vmax.f32 %v1810, 0.0
        %v2140 = vmax.f32 %v1812, 0.0
        %v2141 = vmax.f32 %v2003, 0.0
        %v2142 = vmax.f32 %v2005, 0.0
        %v2143 = vmax.f32 %v1814, 0.0
        %v2144 = vmax.f32 %v1816, 0.0
        %v2145 = vmax.f32 %v2007, 0.0
        %v2146 = vmax.f32 %v2009, 0.0
        %v2147 = vmax.f32 %v1820, 0.0
        %v2148 = vmax.f32 %v1822, 0.0
        %v2149 = vmax.f32 %v2013, 0.0
        %v2150 = vmax.f32 %v2015, 0.0
        %v2151 = vmax.f32 %v1824, 0.0
        %v2152 = vmax.f32 %v1826, 0.0
        %v2153 = vmax.f32 %v2017, 0.0
        %v2154 = vmax.f32 %v2019, 0.0
        %v2155 = vmax.f32 %v1830, 0.0
        %v2156 = vmax.f32 %v1832, 0.0
        %v2157 = vmax.f32 %v2023, 0.0
        %v2158 = vmax.f32 %v2025, 0.0
        %v2159 = vmax.f32 %v1834, 0.0
        %v2160 = vmax.f32 %v1836, 0.0
        %v2161 = vmax.f32 %v2027, 0.0
        %v2162 = vmax.f32 %v2029, 0.0
        %v2163 = vmax.f32 %v1840, 0.0
        %v2164 = vmax.f32 %v1842, 0.0
        %v2165 = vmax.f32 %v2033, 0.0
        %v2166 = vmax.f32 %v2035, 0.0
        %v2167 = vmax.f32 %v1844, 0.0
        %v2168 = vmax.f32 %v1846, 0.0
        %v2169 = vmax.f32 %v2037, 0.0
        %v2170 = vmax.f32 %v2039, 0.0
        %v2171 = vmax.f32 %v1850, 0.0
        %v2172 = vmax.f32 %v1852, 0.0
        %v2173 = vmax.f32 %v2043, 0.0
        %v2174 = vmax.f32 %v2045, 0.0
        %v2175 = vmax.f32 %v1854, 0.0
        %v2176 = vmax.f32 %v1856, 0.0
        %v2177 = vmax.f32 %v2047, 0.0
        %v2178 = vmax.f32 %v2049, 0.0
        %v2179 = vpack.c.bf16 %v2055, %v2051
        %v2180 = vpack.c.bf16 %v2056, %v2052
        %v2181 = vpack.c.bf16 %v2057, %v2053
        %v2182 = vpack.c.bf16 %v2058, %v2054
        %v2183 = vpack.c.bf16 %v2063, %v2059
        %v2184 = vpack.c.bf16 %v2064, %v2060
        %v2185 = vpack.c.bf16 %v2065, %v2061
        %v2186 = vpack.c.bf16 %v2066, %v2062
        %v2187 = vpack.c.bf16 %v2071, %v2067
        %v2188 = vpack.c.bf16 %v2072, %v2068
        %v2189 = vpack.c.bf16 %v2073, %v2069
        %v2190 = vpack.c.bf16 %v2074, %v2070
        %v2191 = vpack.c.bf16 %v2079, %v2075
        %v2192 = vpack.c.bf16 %v2080, %v2076
        %v2193 = vpack.c.bf16 %v2081, %v2077
        %v2194 = vpack.c.bf16 %v2082, %v2078
        %v2195 = vpack.c.bf16 %v2087, %v2083
        %v2196 = vpack.c.bf16 %v2088, %v2084
        %v2197 = vpack.c.bf16 %v2089, %v2085
        %v2198 = vpack.c.bf16 %v2090, %v2086
        %v2199 = vpack.c.bf16 %v2095, %v2091
        %v2200 = vpack.c.bf16 %v2096, %v2092
        %v2201 = vpack.c.bf16 %v2097, %v2093
        %v2202 = vpack.c.bf16 %v2098, %v2094
        %v2203 = vpack.c.bf16 %v2103, %v2099
        %v2204 = vpack.c.bf16 %v2104, %v2100
        %v2205 = vpack.c.bf16 %v2105, %v2101
        %v2206 = vpack.c.bf16 %v2106, %v2102
        %v2207 = vpack.c.bf16 %v2111, %v2107
        %v2208 = vpack.c.bf16 %v2112, %v2108
        %v2209 = vpack.c.bf16 %v2113, %v2109
        %v2210 = vpack.c.bf16 %v2114, %v2110
        %v2211 = vpack.c.bf16 %v2119, %v2115
        %v2212 = vpack.c.bf16 %v2120, %v2116
        %v2213 = vpack.c.bf16 %v2121, %v2117
        %v2214 = vpack.c.bf16 %v2122, %v2118
        %v2215 = vpack.c.bf16 %v2127, %v2123
        %v2216 = vpack.c.bf16 %v2128, %v2124
        %v2217 = vpack.c.bf16 %v2129, %v2125
        %v2218 = vpack.c.bf16 %v2130, %v2126
        %v2219 = vpack.c.bf16 %v2135, %v2131
        %v2220 = vpack.c.bf16 %v2136, %v2132
        %v2221 = vpack.c.bf16 %v2137, %v2133
        %v2222 = vpack.c.bf16 %v2138, %v2134
        %v2223 = vpack.c.bf16 %v2143, %v2139
        %v2224 = vpack.c.bf16 %v2144, %v2140
        %v2225 = vpack.c.bf16 %v2145, %v2141
        %v2226 = vpack.c.bf16 %v2146, %v2142
        %v2227 = vpack.c.bf16 %v2151, %v2147
        %v2228 = vpack.c.bf16 %v2152, %v2148
        %v2229 = vpack.c.bf16 %v2153, %v2149
        %v2230 = vpack.c.bf16 %v2154, %v2150
        %v2231 = vpack.c.bf16 %v2159, %v2155
        %v2232 = vpack.c.bf16 %v2160, %v2156
        %v2233 = vpack.c.bf16 %v2161, %v2157
        %v2234 = vpack.c.bf16 %v2162, %v2158
        %v2235 = vpack.c.bf16 %v2167, %v2163
        %v2236 = vpack.c.bf16 %v2168, %v2164
        %v2237 = vpack.c.bf16 %v2169, %v2165
        %v2238 = vpack.c.bf16 %v2170, %v2166
        %v2239 = vpack.c.bf16 %v2175, %v2171
        %v2240 = vpack.c.bf16 %v2176, %v2172
        %v2241 = vpack.c.bf16 %v2177, %v2173
        %v2242 = vpack.c.bf16 %v2178, %v2174
        %v2243 = vld [vmem:[%s5] sm:$0xf]
        %v2244 = vld [vmem:[%s5 + $0x4] sm:$0xf]
        %v2245 = vld [vmem:[%s5 + $0x8] sm:$0xf]
        %v2246 = vld [vmem:[%s5 + $0xc] sm:$0xf]
        %v2247 = vld [vmem:[%s5 + $0x10] sm:$0xf]
        %v2248 = vld [vmem:[%s5 + $0x14] sm:$0xf]
        %v2249 = vld [vmem:[%s5 + $0x18] sm:$0xf]
        %v2250 = vld [vmem:[%s5 + $0x1c] sm:$0xf]
        %v2251 = vld [vmem:[%s5 + $0x20] sm:$0xf]
        %v2252 = vld [vmem:[%s5 + $0x24] sm:$0xf]
        %v2253 = vld [vmem:[%s5 + $0x28] sm:$0xf]
        %v2254 = vld [vmem:[%s5 + $0x2c] sm:$0xf]
        %v2255 = vld [vmem:[%s5 + $0x30] sm:$0xf]
        %v2256 = vld [vmem:[%s5 + $0x34] sm:$0xf]
        %v2257 = vld [vmem:[%s5 + $0x38] sm:$0xf]
        %v2258 = vld [vmem:[%s5 + $0x3c] sm:$0xf]
        %v2259 = vld [vmem:[%s5 + $0x40] sm:$0xf]
        %v2260 = vld [vmem:[%s5 + $0x44] sm:$0xf]
        %v2261 = vld [vmem:[%s5 + $0x48] sm:$0xf]
        %v2262 = vld [vmem:[%s5 + $0x4c] sm:$0xf]
        %v2263 = vld [vmem:[%s5 + $0x50] sm:$0xf]
        %v2264 = vld [vmem:[%s5 + $0x54] sm:$0xf]
        %v2265 = vld [vmem:[%s5 + $0x58] sm:$0xf]
        %v2266 = vld [vmem:[%s5 + $0x5c] sm:$0xf]
        %v2267 = vld [vmem:[%s5 + $0x60] sm:$0xf]
        %v2268 = vld [vmem:[%s5 + $0x64] sm:$0xf]
        %v2269 = vld [vmem:[%s5 + $0x68] sm:$0xf]
        %v2270 = vld [vmem:[%s5 + $0x6c] sm:$0xf]
        %v2271 = vld [vmem:[%s5 + $0x70] sm:$0xf]
        %v2272 = vld [vmem:[%s5 + $0x74] sm:$0xf]
        %v2273 = vld [vmem:[%s5 + $0x78] sm:$0xf]
        %v2274 = vld [vmem:[%s5 + $0x7c] sm:$0xf]
        %v2275 = vld [vmem:[%s5 + $0x80] sm:$0xf]
        %v2276 = vld [vmem:[%s5 + $0x84] sm:$0xf]
        %v2277 = vld [vmem:[%s5 + $0x88] sm:$0xf]
        %v2278 = vld [vmem:[%s5 + $0x8c] sm:$0xf]
        %v2279 = vld [vmem:[%s5 + $0x90] sm:$0xf]
        %v2280 = vld [vmem:[%s5 + $0x94] sm:$0xf]
        %v2281 = vld [vmem:[%s5 + $0x98] sm:$0xf]
        %v2282 = vld [vmem:[%s5 + $0x9c] sm:$0xf]
        %v2283 = vld [vmem:[%s5 + $0xa0] sm:$0xf]
        %v2284 = vld [vmem:[%s5 + $0xa4] sm:$0xf]
        %v2285 = vld [vmem:[%s5 + $0xa8] sm:$0xf]
        %v2286 = vld [vmem:[%s5 + $0xac] sm:$0xf]
        %v2287 = vld [vmem:[%s5 + $0xb0] sm:$0xf]
        %v2288 = vld [vmem:[%s5 + $0xb4] sm:$0xf]
        %v2289 = vld [vmem:[%s5 + $0xb8] sm:$0xf]
        %v2290 = vld [vmem:[%s5 + $0xbc] sm:$0xf]
        %v2291 = vld [vmem:[%s5 + $0xc0] sm:$0xf]
        %v2292 = vld [vmem:[%s5 + $0xc4] sm:$0xf]
        %v2293 = vld [vmem:[%s5 + $0xc8] sm:$0xf]
        %v2294 = vld [vmem:[%s5 + $0xcc] sm:$0xf]
        %v2295 = vld [vmem:[%s5 + $0xd0] sm:$0xf]
        %v2296 = vld [vmem:[%s5 + $0xd4] sm:$0xf]
        %v2297 = vld [vmem:[%s5 + $0xd8] sm:$0xf]
        %v2298 = vld [vmem:[%s5 + $0xdc] sm:$0xf]
        %v2299 = vld [vmem:[%s5 + $0xe0] sm:$0xf]
        %v2300 = vld [vmem:[%s5 + $0xe4] sm:$0xf]
        %v2301 = vld [vmem:[%s5 + $0xe8] sm:$0xf]
        %v2302 = vld [vmem:[%s5 + $0xec] sm:$0xf]
        %v2303 = vld [vmem:[%s5 + $0xf0] sm:$0xf]
        %v2304 = vld [vmem:[%s5 + $0xf4] sm:$0xf]
        %v2305 = vld [vmem:[%s5 + $0xf8] sm:$0xf]
        %v2306 = vld [vmem:[%s5 + $0xfc] sm:$0xf]
        %v2307 = vld [vmem:[%s6] sm:$0x1]
        %v2309 = vlaneseq
        %v2310 = vshrl.u32 %v2309, 7
        %v2311 = vsub.s32 0, %v2310
        %v2312 = vrot.slane %v2307, %v2311
        %v2378 = vunpack.c.l.b16 %v2243
        %v2379 = vunpack.c.l.b16 %v2244
        %v2380 = vunpack.c.l.b16 %v2245
        %v2381 = vunpack.c.l.b16 %v2246
        %v2382 = vunpack.c.l.b16 %v2247
        %v2383 = vunpack.c.l.b16 %v2248
        %v2384 = vunpack.c.l.b16 %v2249
        %v2385 = vunpack.c.l.b16 %v2250
        %v2386 = vunpack.c.l.b16 %v2251
        %v2387 = vunpack.c.l.b16 %v2252
        %v2388 = vunpack.c.l.b16 %v2253
        %v2389 = vunpack.c.l.b16 %v2254
        %v2390 = vunpack.c.l.b16 %v2255
        %v2391 = vunpack.c.l.b16 %v2256
        %v2392 = vunpack.c.l.b16 %v2257
        %v2393 = vunpack.c.l.b16 %v2258
        %v2394 = vunpack.c.l.b16 %v2259
        %v2395 = vunpack.c.l.b16 %v2260
        %v2396 = vunpack.c.l.b16 %v2261
        %v2397 = vunpack.c.l.b16 %v2262
        %v2398 = vunpack.c.l.b16 %v2263
        %v2399 = vunpack.c.l.b16 %v2264
        %v2400 = vunpack.c.l.b16 %v2265
        %v2401 = vunpack.c.l.b16 %v2266
        %v2402 = vunpack.c.l.b16 %v2267
        %v2403 = vunpack.c.l.b16 %v2268
        %v2404 = vunpack.c.l.b16 %v2269
        %v2405 = vunpack.c.l.b16 %v2270
        %v2406 = vunpack.c.l.b16 %v2271
        %v2407 = vunpack.c.l.b16 %v2272
        %v2408 = vunpack.c.l.b16 %v2273
        %v2409 = vunpack.c.l.b16 %v2274
        %v2410 = vunpack.c.l.b16 %v2275
        %v2411 = vunpack.c.l.b16 %v2276
        %v2412 = vunpack.c.l.b16 %v2277
        %v2413 = vunpack.c.l.b16 %v2278
        %v2414 = vunpack.c.l.b16 %v2279
        %v2415 = vunpack.c.l.b16 %v2280
        %v2416 = vunpack.c.l.b16 %v2281
        %v2417 = vunpack.c.l.b16 %v2282
        %v2418 = vunpack.c.l.b16 %v2283
        %v2419 = vunpack.c.l.b16 %v2284
        %v2420 = vunpack.c.l.b16 %v2285
        %v2421 = vunpack.c.l.b16 %v2286
        %v2422 = vunpack.c.l.b16 %v2287
        %v2423 = vunpack.c.l.b16 %v2288
        %v2424 = vunpack.c.l.b16 %v2289
        %v2425 = vunpack.c.l.b16 %v2290
        %v2426 = vunpack.c.l.b16 %v2291
        %v2427 = vunpack.c.l.b16 %v2292
        %v2428 = vunpack.c.l.b16 %v2293
        %v2429 = vunpack.c.l.b16 %v2294
        %v2430 = vunpack.c.l.b16 %v2295
        %v2431 = vunpack.c.l.b16 %v2296
        %v2432 = vunpack.c.l.b16 %v2297
        %v2433 = vunpack.c.l.b16 %v2298
        %v2434 = vunpack.c.l.b16 %v2299
        %v2435 = vunpack.c.l.b16 %v2300
        %v2436 = vunpack.c.l.b16 %v2301
        %v2437 = vunpack.c.l.b16 %v2302
        %v2438 = vunpack.c.l.b16 %v2303
        %v2439 = vunpack.c.l.b16 %v2304
        %v2440 = vunpack.c.l.b16 %v2305
        %v2441 = vunpack.c.l.b16 %v2306
        %v2442 = vpack.c.b16 %v2379, %v2378
        %v2443 = vpack.c.b16 %v2381, %v2380
        %v2444 = vpack.c.b16 %v2383, %v2382
        %v2445 = vpack.c.b16 %v2385, %v2384
        %v2446 = vpack.c.b16 %v2387, %v2386
        %v2447 = vpack.c.b16 %v2389, %v2388
        %v2448 = vpack.c.b16 %v2391, %v2390
        %v2449 = vpack.c.b16 %v2393, %v2392
        %v2450 = vpack.c.b16 %v2395, %v2394
        %v2451 = vpack.c.b16 %v2397, %v2396
        %v2452 = vpack.c.b16 %v2399, %v2398
        %v2453 = vpack.c.b16 %v2401, %v2400
        %v2454 = vpack.c.b16 %v2403, %v2402
        %v2455 = vpack.c.b16 %v2405, %v2404
        %v2456 = vpack.c.b16 %v2407, %v2406
        %v2457 = vpack.c.b16 %v2409, %v2408
        %v2458 = vpack.c.b16 %v2411, %v2410
        %v2459 = vpack.c.b16 %v2413, %v2412
        %v2460 = vpack.c.b16 %v2415, %v2414
        %v2461 = vpack.c.b16 %v2417, %v2416
        %v2462 = vpack.c.b16 %v2419, %v2418
        %v2463 = vpack.c.b16 %v2421, %v2420
        %v2464 = vpack.c.b16 %v2423, %v2422
        %v2465 = vpack.c.b16 %v2425, %v2424
        %v2466 = vpack.c.b16 %v2427, %v2426
        %v2467 = vpack.c.b16 %v2429, %v2428
        %v2468 = vpack.c.b16 %v2431, %v2430
        %v2469 = vpack.c.b16 %v2433, %v2432
        %v2470 = vpack.c.b16 %v2435, %v2434
        %v2471 = vpack.c.b16 %v2437, %v2436
        %v2472 = vpack.c.b16 %v2439, %v2438
        %v2473 = vpack.c.b16 %v2441, %v2440
        %2506 = vmatprep.subr.bf16.mxu0 0
        %2507 = vmatpush1.bf16.msra.mxu0 %v2449
        %2508 = vmatprep.subr.bf16.mxu0 0
        %2509 = vmatpush1.bf16.msra.mxu0 %v2448
        %2510 = vmatprep.subr.bf16.mxu0 0
        %2511 = vmatpush1.bf16.msra.mxu0 %v2447
        %2512 = vmatprep.subr.bf16.mxu0 0
        %2513 = vmatpush1.bf16.msra.mxu0 %v2446
        %2514 = vmatprep.subr.bf16.mxu0 0
        %2515 = vmatpush1.bf16.msra.mxu0 %v2445
        %2516 = vmatprep.subr.bf16.mxu0 0
        %2517 = vmatpush1.bf16.msra.mxu0 %v2444
        %2518 = vmatprep.subr.bf16.mxu0 0
        %2519 = vmatpush1.bf16.msra.mxu0 %v2443
        %2520 = vmatprep.subr.bf16.mxu0 0
        %2521 = vmatpush1.bf16.msra.mxu0 %v2442
        %2522 = vmatprep.subr.bf16.mxu0 0
        %2523 = vmatpush2.bf16.msra.mxu0 %v2457
        %2524 = vmatprep.subr.bf16.mxu0 0
        %2525 = vmatpush2.bf16.msra.mxu0 %v2456
        %2526 = vmatprep.subr.bf16.mxu0 0
        %2527 = vmatpush2.bf16.msra.mxu0 %v2455
        %2528 = vmatprep.subr.bf16.mxu0 0
        %2529 = vmatpush2.bf16.msra.mxu0 %v2454
        %2530 = vmatprep.subr.bf16.mxu0 0
        %2531 = vmatpush2.bf16.msra.mxu0 %v2453
        %2532 = vmatprep.subr.bf16.mxu0 0
        %2533 = vmatpush2.bf16.msra.mxu0 %v2452
        %2534 = vmatprep.subr.bf16.mxu0 0
        %2535 = vmatpush2.bf16.msra.mxu0 %v2451
        %2536 = vmatprep.subr.bf16.mxu0 0
        %2537 = vmatpush2.bf16.msra.mxu0 %v2450
        %2538 = vmatprep.mubr.bf16.mxu0 %v2180
        %2539 = vmatmul.mubr.bf16.gmra.mxu0 %v2179
        %v2540 = vpop.f32.mrf.mxu0
        %v2541 = vadd.f32 %v2312, %v2540
        %v2542 = vpop.f32.mrf.mxu0
        %v2543 = vpop.f32.mrf.mxu0
        %v2544 = vadd.f32 %v2312, %v2543
        %v2545 = vpop.f32.mrf.mxu0
        %2546 = vmatprep.mubr.bf16.mxu0 %v2184
        %2547 = vmatmul.mubr.bf16.gmra.mxu0 %v2183
        %v2548 = vpop.f32.mrf.mxu0
        %v2549 = vadd.f32 %v2312, %v2548
        %v2550 = vpop.f32.mrf.mxu0
        %v2551 = vpop.f32.mrf.mxu0
        %v2552 = vadd.f32 %v2312, %v2551
        %v2553 = vpop.f32.mrf.mxu0
        %2554 = vmatprep.mubr.bf16.mxu0 %v2188
        %2555 = vmatmul.mubr.bf16.gmra.mxu0 %v2187
        %v2556 = vpop.f32.mrf.mxu0
        %v2557 = vadd.f32 %v2312, %v2556
        %v2558 = vpop.f32.mrf.mxu0
        %v2559 = vpop.f32.mrf.mxu0
        %v2560 = vadd.f32 %v2312, %v2559
        %v2561 = vpop.f32.mrf.mxu0
        %2562 = vmatprep.mubr.bf16.mxu0 %v2192
        %2563 = vmatmul.mubr.bf16.gmra.mxu0 %v2191
        %v2564 = vpop.f32.mrf.mxu0
        %v2565 = vadd.f32 %v2312, %v2564
        %v2566 = vpop.f32.mrf.mxu0
        %v2567 = vpop.f32.mrf.mxu0
        %v2568 = vadd.f32 %v2312, %v2567
        %v2569 = vpop.f32.mrf.mxu0
        %2570 = vmatprep.mubr.bf16.mxu0 %v2196
        %2571 = vmatmul.mubr.bf16.gmra.mxu0 %v2195
        %v2572 = vpop.f32.mrf.mxu0
        %v2573 = vadd.f32 %v2312, %v2572
        %v2574 = vpop.f32.mrf.mxu0
        %v2575 = vpop.f32.mrf.mxu0
        %v2576 = vadd.f32 %v2312, %v2575
        %v2577 = vpop.f32.mrf.mxu0
        %2578 = vmatprep.mubr.bf16.mxu0 %v2200
        %2579 = vmatmul.mubr.bf16.gmra.mxu0 %v2199
        %v2580 = vpop.f32.mrf.mxu0
        %v2581 = vadd.f32 %v2312, %v2580
        %v2582 = vpop.f32.mrf.mxu0
        %v2583 = vpop.f32.mrf.mxu0
        %v2584 = vadd.f32 %v2312, %v2583
        %v2585 = vpop.f32.mrf.mxu0
        %2586 = vmatprep.mubr.bf16.mxu0 %v2204
        %2587 = vmatmul.mubr.bf16.gmra.mxu0 %v2203
        %v2588 = vpop.f32.mrf.mxu0
        %v2589 = vadd.f32 %v2312, %v2588
        %v2590 = vpop.f32.mrf.mxu0
        %v2591 = vpop.f32.mrf.mxu0
        %v2592 = vadd.f32 %v2312, %v2591
        %v2593 = vpop.f32.mrf.mxu0
        %2594 = vmatprep.mubr.bf16.mxu0 %v2208
        %2595 = vmatmul.mubr.bf16.gmra.mxu0 %v2207
        %v2596 = vpop.f32.mrf.mxu0
        %v2597 = vadd.f32 %v2312, %v2596
        %v2598 = vpop.f32.mrf.mxu0
        %v2599 = vpop.f32.mrf.mxu0
        %v2600 = vadd.f32 %v2312, %v2599
        %v2601 = vpop.f32.mrf.mxu0
        %2602 = vmatprep.mubr.bf16.mxu0 %v2212
        %2603 = vmatmul.mubr.bf16.gmra.mxu0 %v2211
        %v2604 = vpop.f32.mrf.mxu0
        %v2605 = vadd.f32 %v2312, %v2604
        %v2606 = vpop.f32.mrf.mxu0
        %v2607 = vpop.f32.mrf.mxu0
        %v2608 = vadd.f32 %v2312, %v2607
        %v2609 = vpop.f32.mrf.mxu0
        %2610 = vmatprep.mubr.bf16.mxu0 %v2216
        %2611 = vmatmul.mubr.bf16.gmra.mxu0 %v2215
        %v2612 = vpop.f32.mrf.mxu0
        %v2613 = vadd.f32 %v2312, %v2612
        %v2614 = vpop.f32.mrf.mxu0
        %v2615 = vpop.f32.mrf.mxu0
        %v2616 = vadd.f32 %v2312, %v2615
        %v2617 = vpop.f32.mrf.mxu0
        %2618 = vmatprep.mubr.bf16.mxu0 %v2220
        %2619 = vmatmul.mubr.bf16.gmra.mxu0 %v2219
        %v2620 = vpop.f32.mrf.mxu0
        %v2621 = vadd.f32 %v2312, %v2620
        %v2622 = vpop.f32.mrf.mxu0
        %v2623 = vpop.f32.mrf.mxu0
        %v2624 = vadd.f32 %v2312, %v2623
        %v2625 = vpop.f32.mrf.mxu0
        %2626 = vmatprep.mubr.bf16.mxu0 %v2224
        %2627 = vmatmul.mubr.bf16.gmra.mxu0 %v2223
        %v2628 = vpop.f32.mrf.mxu0
        %v2629 = vadd.f32 %v2312, %v2628
        %v2630 = vpop.f32.mrf.mxu0
        %v2631 = vpop.f32.mrf.mxu0
        %v2632 = vadd.f32 %v2312, %v2631
        %v2633 = vpop.f32.mrf.mxu0
        %2634 = vmatprep.mubr.bf16.mxu0 %v2228
        %2635 = vmatmul.mubr.bf16.gmra.mxu0 %v2227
        %v2636 = vpop.f32.mrf.mxu0
        %v2637 = vadd.f32 %v2312, %v2636
        %v2638 = vpop.f32.mrf.mxu0
        %v2639 = vpop.f32.mrf.mxu0
        %v2640 = vadd.f32 %v2312, %v2639
        %v2641 = vpop.f32.mrf.mxu0
        %2642 = vmatprep.mubr.bf16.mxu0 %v2232
        %2643 = vmatmul.mubr.bf16.gmra.mxu0 %v2231
        %v2644 = vpop.f32.mrf.mxu0
        %v2645 = vadd.f32 %v2312, %v2644
        %v2646 = vpop.f32.mrf.mxu0
        %v2647 = vpop.f32.mrf.mxu0
        %v2648 = vadd.f32 %v2312, %v2647
        %v2649 = vpop.f32.mrf.mxu0
        %2650 = vmatprep.mubr.bf16.mxu0 %v2236
        %2651 = vmatmul.mubr.bf16.gmra.mxu0 %v2235
        %v2652 = vpop.f32.mrf.mxu0
        %v2653 = vadd.f32 %v2312, %v2652
        %v2654 = vpop.f32.mrf.mxu0
        %v2655 = vpop.f32.mrf.mxu0
        %v2656 = vadd.f32 %v2312, %v2655
        %v2657 = vpop.f32.mrf.mxu0
        %2658 = vmatprep.mubr.bf16.mxu0 %v2240
        %2659 = vmatmul.mubr.bf16.gmra.mxu0 %v2239
        %v2660 = vpop.f32.mrf.mxu0
        %v2661 = vadd.f32 %v2312, %v2660
        %v2662 = vpop.f32.mrf.mxu0
        %v2663 = vpop.f32.mrf.mxu0
        %v2664 = vadd.f32 %v2312, %v2663
        %v2665 = vpop.f32.mrf.mxu0
        %2666 = vdwg.mxu0
        %2667 = vmatprep.subr.bf16.mxu0 0
        %2668 = vmatpush1.bf16.msra.mxu0 %v2465
        %2669 = vmatprep.subr.bf16.mxu0 0
        %2670 = vmatpush1.bf16.msra.mxu0 %v2464
        %2671 = vmatprep.subr.bf16.mxu0 0
        %2672 = vmatpush1.bf16.msra.mxu0 %v2463
        %2673 = vmatprep.subr.bf16.mxu0 0
        %2674 = vmatpush1.bf16.msra.mxu0 %v2462
        %2675 = vmatprep.subr.bf16.mxu0 0
        %2676 = vmatpush1.bf16.msra.mxu0 %v2461
        %2677 = vmatprep.subr.bf16.mxu0 0
        %2678 = vmatpush1.bf16.msra.mxu0 %v2460
        %2679 = vmatprep.subr.bf16.mxu0 0
        %2680 = vmatpush1.bf16.msra.mxu0 %v2459
        %2681 = vmatprep.subr.bf16.mxu0 0
        %2682 = vmatpush1.bf16.msra.mxu0 %v2458
        %2683 = vmatprep.subr.bf16.mxu0 0
        %2684 = vmatpush2.bf16.msra.mxu0 %v2473
        %2685 = vmatprep.subr.bf16.mxu0 0
        %2686 = vmatpush2.bf16.msra.mxu0 %v2472
        %2687 = vmatprep.subr.bf16.mxu0 0
        %2688 = vmatpush2.bf16.msra.mxu0 %v2471
        %2689 = vmatprep.subr.bf16.mxu0 0
        %2690 = vmatpush2.bf16.msra.mxu0 %v2470
        %2691 = vmatprep.subr.bf16.mxu0 0
        %2692 = vmatpush2.bf16.msra.mxu0 %v2469
        %2693 = vmatprep.subr.bf16.mxu0 0
        %2694 = vmatpush2.bf16.msra.mxu0 %v2468
        %2695 = vmatprep.subr.bf16.mxu0 0
        %2696 = vmatpush2.bf16.msra.mxu0 %v2467
        %2697 = vmatprep.subr.bf16.mxu0 0
        %2698 = vmatpush2.bf16.msra.mxu0 %v2466
        %2699 = vmatprep.mubr.bf16.mxu0 %v2182
        %2700 = vmatmul.mubr.bf16.gmra.mxu0 %v2181
        %v2701 = vpop.f32.mrf.mxu0
        %v2702 = vadd.f32 %v2541, %v2701
        %v2703 = vpop.f32.mrf.mxu0
        %v2704 = vpop.f32.mrf.mxu0
        %v2705 = vadd.f32 %v2544, %v2704
        %v2706 = vpop.f32.mrf.mxu0
        %2707 = vmatprep.mubr.bf16.mxu0 %v2186
        %2708 = vmatmul.mubr.bf16.gmra.mxu0 %v2185
        %v2709 = vpop.f32.mrf.mxu0
        %v2710 = vadd.f32 %v2549, %v2709
        %v2711 = vpop.f32.mrf.mxu0
        %v2712 = vpop.f32.mrf.mxu0
        %v2713 = vadd.f32 %v2552, %v2712
        %v2714 = vpop.f32.mrf.mxu0
        %2715 = vmatprep.mubr.bf16.mxu0 %v2190
        %2716 = vmatmul.mubr.bf16.gmra.mxu0 %v2189
        %v2717 = vpop.f32.mrf.mxu0
        %v2718 = vadd.f32 %v2557, %v2717
        %v2719 = vpop.f32.mrf.mxu0
        %v2720 = vpop.f32.mrf.mxu0
        %v2721 = vadd.f32 %v2560, %v2720
        %v2722 = vpop.f32.mrf.mxu0
        %2723 = vmatprep.mubr.bf16.mxu0 %v2194
        %2724 = vmatmul.mubr.bf16.gmra.mxu0 %v2193
        %v2725 = vpop.f32.mrf.mxu0
        %v2726 = vadd.f32 %v2565, %v2725
        %v2727 = vpop.f32.mrf.mxu0
        %v2728 = vpop.f32.mrf.mxu0
        %v2729 = vadd.f32 %v2568, %v2728
        %v2730 = vpop.f32.mrf.mxu0
        %2731 = vmatprep.mubr.bf16.mxu0 %v2198
        %2732 = vmatmul.mubr.bf16.gmra.mxu0 %v2197
        %v2733 = vpop.f32.mrf.mxu0
        %v2734 = vadd.f32 %v2573, %v2733
        %v2735 = vpop.f32.mrf.mxu0
        %v2736 = vpop.f32.mrf.mxu0
        %v2737 = vadd.f32 %v2576, %v2736
        %v2738 = vpop.f32.mrf.mxu0
        %2739 = vmatprep.mubr.bf16.mxu0 %v2202
        %2740 = vmatmul.mubr.bf16.gmra.mxu0 %v2201
        %v2741 = vpop.f32.mrf.mxu0
        %v2742 = vadd.f32 %v2581, %v2741
        %v2743 = vpop.f32.mrf.mxu0
        %v2744 = vpop.f32.mrf.mxu0
        %v2745 = vadd.f32 %v2584, %v2744
        %v2746 = vpop.f32.mrf.mxu0
        %2747 = vmatprep.mubr.bf16.mxu0 %v2206
        %2748 = vmatmul.mubr.bf16.gmra.mxu0 %v2205
        %v2749 = vpop.f32.mrf.mxu0
        %v2750 = vadd.f32 %v2589, %v2749
        %v2751 = vpop.f32.mrf.mxu0
        %v2752 = vpop.f32.mrf.mxu0
        %v2753 = vadd.f32 %v2592, %v2752
        %v2754 = vpop.f32.mrf.mxu0
        %2755 = vmatprep.mubr.bf16.mxu0 %v2210
        %2756 = vmatmul.mubr.bf16.gmra.mxu0 %v2209
        %v2757 = vpop.f32.mrf.mxu0
        %v2758 = vadd.f32 %v2597, %v2757
        %v2759 = vpop.f32.mrf.mxu0
        %v2760 = vpop.f32.mrf.mxu0
        %v2761 = vadd.f32 %v2600, %v2760
        %v2762 = vpop.f32.mrf.mxu0
        %2763 = vmatprep.mubr.bf16.mxu0 %v2214
        %2764 = vmatmul.mubr.bf16.gmra.mxu0 %v2213
        %v2765 = vpop.f32.mrf.mxu0
        %v2766 = vadd.f32 %v2605, %v2765
        %v2767 = vpop.f32.mrf.mxu0
        %v2768 = vpop.f32.mrf.mxu0
        %v2769 = vadd.f32 %v2608, %v2768
        %v2770 = vpop.f32.mrf.mxu0
        %2771 = vmatprep.mubr.bf16.mxu0 %v2218
        %2772 = vmatmul.mubr.bf16.gmra.mxu0 %v2217
        %v2773 = vpop.f32.mrf.mxu0
        %v2774 = vadd.f32 %v2613, %v2773
        %v2775 = vpop.f32.mrf.mxu0
        %v2776 = vpop.f32.mrf.mxu0
        %v2777 = vadd.f32 %v2616, %v2776
        %v2778 = vpop.f32.mrf.mxu0
        %2779 = vmatprep.mubr.bf16.mxu0 %v2222
        %2780 = vmatmul.mubr.bf16.gmra.mxu0 %v2221
        %v2781 = vpop.f32.mrf.mxu0
        %v2782 = vadd.f32 %v2621, %v2781
        %v2783 = vpop.f32.mrf.mxu0
        %v2784 = vpop.f32.mrf.mxu0
        %v2785 = vadd.f32 %v2624, %v2784
        %v2786 = vpop.f32.mrf.mxu0
        %2787 = vmatprep.mubr.bf16.mxu0 %v2226
        %2788 = vmatmul.mubr.bf16.gmra.mxu0 %v2225
        %v2789 = vpop.f32.mrf.mxu0
        %v2790 = vadd.f32 %v2629, %v2789
        %v2791 = vpop.f32.mrf.mxu0
        %v2792 = vpop.f32.mrf.mxu0
        %v2793 = vadd.f32 %v2632, %v2792
        %v2794 = vpop.f32.mrf.mxu0
        %2795 = vmatprep.mubr.bf16.mxu0 %v2230
        %2796 = vmatmul.mubr.bf16.gmra.mxu0 %v2229
        %v2797 = vpop.f32.mrf.mxu0
        %v2798 = vadd.f32 %v2637, %v2797
        %v2799 = vpop.f32.mrf.mxu0
        %v2800 = vpop.f32.mrf.mxu0
        %v2801 = vadd.f32 %v2640, %v2800
        %v2802 = vpop.f32.mrf.mxu0
        %2803 = vmatprep.mubr.bf16.mxu0 %v2234
        %2804 = vmatmul.mubr.bf16.gmra.mxu0 %v2233
        %v2805 = vpop.f32.mrf.mxu0
        %v2806 = vadd.f32 %v2645, %v2805
        %v2807 = vpop.f32.mrf.mxu0
        %v2808 = vpop.f32.mrf.mxu0
        %v2809 = vadd.f32 %v2648, %v2808
        %v2810 = vpop.f32.mrf.mxu0
        %2811 = vmatprep.mubr.bf16.mxu0 %v2238
        %2812 = vmatmul.mubr.bf16.gmra.mxu0 %v2237
        %v2813 = vpop.f32.mrf.mxu0
        %v2814 = vadd.f32 %v2653, %v2813
        %v2815 = vpop.f32.mrf.mxu0
        %v2816 = vpop.f32.mrf.mxu0
        %v2817 = vadd.f32 %v2656, %v2816
        %v2818 = vpop.f32.mrf.mxu0
        %2819 = vmatprep.mubr.bf16.mxu0 %v2242
        %2820 = vmatmul.mubr.bf16.gmra.mxu0 %v2241
        %v2821 = vpop.f32.mrf.mxu0
        %v2822 = vadd.f32 %v2661, %v2821
        %v2823 = vpop.f32.mrf.mxu0
        %v2824 = vpop.f32.mrf.mxu0
        %v2825 = vadd.f32 %v2664, %v2824
        %v2826 = vpop.f32.mrf.mxu0
        %2827 = vdwg.mxu0
        %2828 = vst [vmem:[%s272] sm:$0xff] %v2702
        %2829 = vst [vmem:[%s272 + $0x8] sm:$0xff] %v2705
        %2830 = vst [vmem:[%s272 + $0x10] sm:$0xff] %v2710
        %2831 = vst [vmem:[%s272 + $0x18] sm:$0xff] %v2713
        %2832 = vst [vmem:[%s272 + $0x20] sm:$0xff] %v2718
        %2833 = vst [vmem:[%s272 + $0x28] sm:$0xff] %v2721
        %2834 = vst [vmem:[%s272 + $0x30] sm:$0xff] %v2726
        %2835 = vst [vmem:[%s272 + $0x38] sm:$0xff] %v2729
        %2836 = vst [vmem:[%s272 + $0x40] sm:$0xff] %v2734
        %2837 = vst [vmem:[%s272 + $0x48] sm:$0xff] %v2737
        %2838 = vst [vmem:[%s272 + $0x50] sm:$0xff] %v2742
        %2839 = vst [vmem:[%s272 + $0x58] sm:$0xff] %v2745
        %2840 = vst [vmem:[%s272 + $0x60] sm:$0xff] %v2750
        %2841 = vst [vmem:[%s272 + $0x68] sm:$0xff] %v2753
        %2842 = vst [vmem:[%s272 + $0x70] sm:$0xff] %v2758
        %2843 = vst [vmem:[%s272 + $0x78] sm:$0xff] %v2761
        %2844 = vst [vmem:[%s272 + $0x80] sm:$0xff] %v2766
        %2845 = vst [vmem:[%s272 + $0x88] sm:$0xff] %v2769
        %2846 = vst [vmem:[%s272 + $0x90] sm:$0xff] %v2774
        %2847 = vst [vmem:[%s272 + $0x98] sm:$0xff] %v2777
        %2848 = vst [vmem:[%s272 + $0xa0] sm:$0xff] %v2782
        %2849 = vst [vmem:[%s272 + $0xa8] sm:$0xff] %v2785
        %2850 = vst [vmem:[%s272 + $0xb0] sm:$0xff] %v2790
        %2851 = vst [vmem:[%s272 + $0xb8] sm:$0xff] %v2793
        %2852 = vst [vmem:[%s272 + $0xc0] sm:$0xff] %v2798
        %2853 = vst [vmem:[%s272 + $0xc8] sm:$0xff] %v2801
        %2854 = vst [vmem:[%s272 + $0xd0] sm:$0xff] %v2806
        %2855 = vst [vmem:[%s272 + $0xd8] sm:$0xff] %v2809
        %2856 = vst [vmem:[%s272 + $0xe0] sm:$0xff] %v2814
        %2857 = vst [vmem:[%s272 + $0xe8] sm:$0xff] %v2817
        %2858 = vst [vmem:[%s272 + $0xf0] sm:$0xff] %v2822
        %2859 = vst [vmem:[%s272 + $0xf8] sm:$0xff] %v2825
        %s2860 = sand.u32 %s181, 1
        %s2861 = scalar_lea.sflag [#allocation3], %s2860
        %s2862 = sand.u32 %s181, 1
        %s2863 = smul.addr %s2862, 256
        %s2864 = scalar_lea.vmem [#allocation2], %s2863
        // Predicated region
        $region49: #{tpu_custom_call.1} parent=47 // pred_check
          %p2865 = pneg %p191
        $region50: #{tpu_custom_call.1} parent=47 // pred_check_branch
          %2867 = sbr.rel (%p2865) target = $region52
        $region51: #{tpu_custom_call.1} parent=47 // pred_region
          %s2868 = smul.u32 32, %s21
          %s2870 = ssub.s32 4096, 4096
          %2871 = vsyncadd %s2861, %s2870
          %s2872 = smul.addr %s2868, 128
          %s2873 = scalar_lea.hbm %s7, %s2872
          %s2874 = sshll.u32 %s2864, 4
          %s2875 = int_to_ptr.vmem [resolvable:$true] %s2874
          %2880 = dma.vmem_to_hbm [thread:$0]  %s2875, 4096, %s2873, %s2861, 128, 128, 8
        $region52: #{tpu_custom_call.1} parent=47 // pred_fallthru
          _
      $region48: #{tpu_custom_call.1} parent=5 // pred_fallthru
        _
      %p2881 = scmp.le.s32.totalorder 2, %s16
      // Predicated region
      $region53: #{tpu_custom_call.1} parent=5 // pred_check
        %p2882 = pneg %p2881
      $region54: #{tpu_custom_call.1} parent=5 // pred_check_branch
        %2884 = sbr.rel (%p2882) target = $region56
      $region55: #{tpu_custom_call.1} parent=5 // pred_region
        %s2885 = ssub.s32 %s16, 2
        // Predicated region
        $region57: #{tpu_custom_call.1} parent=55 // pred_check
          %p2886 = pneg %p197
        $region58: #{tpu_custom_call.1} parent=55 // pred_check_branch
          %2888 = sbr.rel (%p2886) target = $region60
        $region59: #{tpu_custom_call.1} parent=55 // pred_region
          %s2889 = sand.u32 %s182, 1
          %s2890 = scalar_lea.sflag [#allocation3], %s2889
          %s2891 = sand.u32 %s182, 1
          %s2892 = smul.addr %s2891, 256
          %s2893 = scalar_lea.vmem [#allocation2], %s2892
          %2894 = dma.done %s2890, 4096
        $region60: #{tpu_custom_call.1} parent=55 // pred_fallthru
          _
      $region56: #{tpu_custom_call.1} parent=5 // pred_fallthru
        _
    $region6: #{tpu_custom_call.1} parent=1 // loop_footer
      %s20 = sadd.s32 1, %s16
    $region7: #{tpu_custom_call.1} parent=1 // loop_footer_branch
      %15 = sbr.rel target = $region3
    $region8: #{tpu_custom_call.1} parent=1 // loop_exit
      _
    %2895 = vsyncpa [#allocation3], 1
    %s2896 = scalar_lea.sflag [#allocation3], 1
    %2897 = vsyncpa %s2896, 1

</llo_original>
